<compile_context>
chip_gen: v7x
topology: tpu7x:2x2x1
jax: 0.10.0
libtpu: 0.0.40
codegen_flags: <defaults>
</compile_context>

<pallas_src>
import functools

import jax
import jax.numpy as jnp
from jax.experimental import pallas as pl
from jax.experimental.pallas import tpu as pltpu

HIDDEN = 256


def _round_up(a, m):
    return (a + m - 1) // m * m


def vae_forward_kernel(
    x_ref, eps_ref,
    w1_ref, b1_ref, w2_ref, b2_ref,        # encoder (scale_l folded into w1)
    wml_ref, bml_ref,                      # fused mean|logstd head
    wd1_ref, bd1_ref, wd2_ref, bd2_ref,    # decoder hidden
    wd3_ref, bd3_ref,                      # decoder output
    out_ref,                               # packed [x_recon | mean | logstd]
    *, input_dim, latent_dim, clip_vae,
):
    bf16 = jnp.bfloat16

    # ---- encoder: Linear -> ReLU -> Linear -> ReLU (bf16 MXU, f32 accum) ----
    x = x_ref[...].astype(bf16)                       # scale_l already in w1
    h = jnp.dot(x, w1_ref[...], preferred_element_type=jnp.float32) + b1_ref[...]
    h = jnp.maximum(h, 0.0)
    h = jnp.dot(h.astype(bf16), w2_ref[...],
                preferred_element_type=jnp.float32) + b2_ref[...]
    h = jnp.maximum(h, 0.0)

    # ---- fused latent heads: one [HIDDEN, 2*latent] matmul ------------------
    ml = jnp.dot(h.astype(bf16), wml_ref[...],
                 preferred_element_type=jnp.float32) + bml_ref[...]
    mean = ml[:, :latent_dim]
    logstd = ml[:, latent_dim:]

    # ---- reparameterization (f32 elementwise) -------------------------------
    z = mean + eps_ref[...] * jnp.exp(logstd)

    # ---- decoder: Linear -> ReLU -> Linear -> ReLU -> Linear ----------------
    d = jnp.dot(z.astype(bf16), wd1_ref[...],
                preferred_element_type=jnp.float32) + bd1_ref[...]
    d = jnp.maximum(d, 0.0)
    d = jnp.dot(d.astype(bf16), wd2_ref[...],
                preferred_element_type=jnp.float32) + bd2_ref[...]
    d = jnp.maximum(d, 0.0)
    xr = jnp.dot(d.astype(bf16), wd3_ref[...],
                 preferred_element_type=jnp.float32) + bd3_ref[...]
    xr = jnp.clip(xr, -jnp.float32(clip_vae), jnp.float32(clip_vae))

    # ---- single packed, lane-denser output store ----------------------------
    out_ref[...] = jnp.concatenate([xr, ml], axis=-1)


def make_vae_params(key, input_dim, latent_dim, dtype=jnp.float32):
    """Deterministic synthetic parameters matching the module's __init__ shapes."""
    def linear(k, fan_in, fan_out):
        kw, kb = jax.random.split(k)
        bound = 1.0 / jnp.sqrt(fan_in)
        w = jax.random.uniform(kw, (fan_in, fan_out), dtype, -bound, bound)
        b = jax.random.uniform(kb, (1, fan_out), dtype, -bound, bound)
        return w, b

    keys = jax.random.split(key, 7)
    w1, b1 = linear(keys[0], input_dim, HIDDEN)     # encoder[0]
    w2, b2 = linear(keys[1], HIDDEN, HIDDEN)        # encoder[2]
    wm, bm = linear(keys[2], HIDDEN, latent_dim)    # mean_layer
    ws, bs = linear(keys[3], HIDDEN, latent_dim)    # logstd_layer
    wd1, bd1 = linear(keys[4], latent_dim, HIDDEN)  # decoder[0]
    wd2, bd2 = linear(keys[5], HIDDEN, HIDDEN)      # decoder[2]
    wd3, bd3 = linear(keys[6], HIDDEN, input_dim)   # decoder[4]
    return (w1, b1, w2, b2, wm, bm, ws, bs, wd1, bd1, wd2, bd2, wd3, bd3)


def vae_forward(x, eps, params, *, scale_l=1000.0, clip_vae=120.0, block_b=None):
    B, input_dim = x.shape
    latent_dim = eps.shape[1]
    (w1, b1, w2, b2, wm, bm, ws, bs, wd1, bd1, wd2, bd2, wd3, bd3) = params

    bf16 = jnp.bfloat16
    # Fold 1/scale_l into the first weight (algebraically identical forward).
    w1s = (w1 * jnp.float32(1.0 / scale_l)).astype(bf16)
    # Fuse mean / logstd heads into a single [HIDDEN, 2*latent] weight.
    wml = jnp.concatenate([wm, ws], axis=1).astype(bf16)
    bml = jnp.concatenate([bm, bs], axis=1)

    weights = (
        w1s, b1, w2.astype(bf16), b2,
        wml, bml,
        wd1.astype(bf16), bd1, wd2.astype(bf16), bd2,
        wd3.astype(bf16), bd3,
    )

    # Batch tile: >= 512 rows when the batch is large, else the (8-rounded)
    # whole batch in one step. TODO(synk): if input_dim ever gets huge
    # (flattened obs), add K/N tiling for w1/wd3 instead of full residency.
    if block_b is None:
        block_b = 512 if B >= 512 else _round_up(B, 8)
    block_b = _round_up(block_b, 8)
    Bp = _round_up(B, block_b)
    if Bp != B:
        pad = Bp - B
        x = jnp.pad(x, ((0, pad), (0, 0)))
        eps = jnp.pad(eps, ((0, pad), (0, 0)))
    nb = Bp // block_b

    out_w = input_dim + 2 * latent_dim

    kernel = functools.partial(
        vae_forward_kernel,
        input_dim=input_dim, latent_dim=latent_dim, clip_vae=clip_vae,
    )

    def batch_spec(width):
        return pl.BlockSpec((block_b, width), lambda i: (i, 0))

    def const_spec(arr):
        # Full array, same block every grid step -> loaded once, VMEM-resident.
        return pl.BlockSpec(arr.shape, lambda i: (0, 0))

    in_specs = (
        [batch_spec(input_dim), batch_spec(latent_dim)]
        + [const_spec(a) for a in weights]
    )
    out_spec = pl.BlockSpec((block_b, out_w), lambda i: (i, 0))

    slab = pl.pallas_call(
        kernel,
        out_shape=jax.ShapeDtypeStruct((Bp, out_w), jnp.float32),
        grid_spec=pltpu.PrefetchScalarGridSpec(
            num_scalar_prefetch=0,
            grid=(nb,),
            in_specs=in_specs,
            out_specs=out_spec,
        ),
        compiler_params=pltpu.CompilerParams(
            dimension_semantics=("parallel",),
        ),
    )(x, eps, *weights)

    slab = slab[:B]
    x_recon = slab[:, :input_dim]
    mean = slab[:, input_dim:input_dim + latent_dim]
    logstd = slab[:, input_dim + latent_dim:]
    return x_recon, mean, logstd


def vae_forward_ref_bf16(x, eps, params, *, scale_l=1000.0, clip_vae=120.0):
    """Pure-JAX reference emulating the kernel's bf16-matmul / f32-accum path."""
    (w1, b1, w2, b2, wm, bm, ws, bs, wd1, bd1, wd2, bd2, wd3, bd3) = params
    bf16 = jnp.bfloat16

    def dot(a, w):
        return jax.lax.dot(a.astype(bf16), w.astype(bf16),
                           preferred_element_type=jnp.float32)

    w1s = w1 * jnp.float32(1.0 / scale_l)
    h = jnp.maximum(dot(x, w1s) + b1, 0.0)
    h = jnp.maximum(dot(h, w2) + b2, 0.0)
    wml = jnp.concatenate([wm, ws], axis=1)
    bml = jnp.concatenate([bm, bs], axis=1)
    ml = dot(h, wml) + bml
    L = eps.shape[1]
    mean, logstd = ml[:, :L], ml[:, L:]
    z = mean + eps * jnp.exp(logstd)
    d = jnp.maximum(dot(z, wd1) + bd1, 0.0)
    d = jnp.maximum(dot(d, wd2) + bd2, 0.0)
    xr = jnp.clip(dot(d, wd3) + bd3, -clip_vae, clip_vae)
    return xr, mean, logstd


def vae_forward_ref(x, eps, params, *, scale_l=1000.0, clip_vae=120.0):
    """Pure-f32 reference with the original module semantics."""
    (w1, b1, w2, b2, wm, bm, ws, bs, wd1, bd1, wd2, bd2, wd3, bd3) = params
    xs = x / scale_l
    h = jnp.maximum(xs @ w1 + b1, 0.0)
    h = jnp.maximum(h @ w2 + b2, 0.0)
    mean = h @ wm + bm
    logstd = h @ ws + bs
    z = mean + eps * jnp.exp(logstd)
    d = jnp.maximum(z @ wd1 + bd1, 0.0)
    d = jnp.maximum(d @ wd2 + bd2, 0.0)
    xr = jnp.clip(d @ wd3 + bd3, -clip_vae, clip_vae)
    return xr, mean, logstd


if __name__ == "__main__":
    # Small shapes consistent with the module's forward: x is [batch, input_dim].
    # B=80 with block_b=32 exercises the batch grid (3 steps) + padding trim.
    B, INPUT_DIM, LATENT_DIM = 80, 16, 8
    SCALE_L, CLIP_VAE = 1000.0, 120.0

    key = jax.random.PRNGKey(0)
    k_x, k_eps, k_params = jax.random.split(key, 3)

    x = jax.random.normal(k_x, (B, INPUT_DIM), jnp.float32) * 50.0
    # torch.randn_like(mean) equivalent — sampled in the wrapper, used in-kernel.
    eps = jax.random.normal(k_eps, (B, LATENT_DIM), jnp.float32)

    params = make_vae_params(k_params, INPUT_DIM, LATENT_DIM)

    x_recon, mean, logstd = jax.block_until_ready(
        vae_forward(x, eps, params, scale_l=SCALE_L, clip_vae=CLIP_VAE, block_b=32)
    )

    # Tight check against the bf16-emulating reference (same arithmetic).
    xr_e, mean_e, logstd_e = vae_forward_ref_bf16(
        x, eps, params, scale_l=SCALE_L, clip_vae=CLIP_VAE)
    assert jnp.allclose(x_recon, xr_e, atol=2e-3, rtol=2e-3)
    assert jnp.allclose(mean, mean_e, atol=2e-3, rtol=2e-3)
    assert jnp.allclose(logstd, logstd_e, atol=2e-3, rtol=2e-3)

    # Loose parity check against the original f32 module semantics.
    xr_f, mean_f, logstd_f = vae_forward_ref(
        x, eps, params, scale_l=SCALE_L, clip_vae=CLIP_VAE)
    assert jnp.max(jnp.abs(x_recon - xr_f)) < 0.1
    assert jnp.max(jnp.abs(mean - mean_f)) < 0.1
    assert jnp.max(jnp.abs(logstd - logstd_f)) < 0.1

    print("KERNEL_OK")
</pallas_src>

<mosaic_0001>
module attributes {stable_mosaic.version = 11 : i64} {
  func.func @vae_forward_kernel(%arg0: i32, %arg1: memref<32x16xf32, #tpu.memory_space<vmem>>, %arg2: memref<32x8xf32, #tpu.memory_space<vmem>>, %arg3: memref<16x256xbf16, #tpu.memory_space<vmem>>, %arg4: memref<1x256xf32, #tpu.memory_space<vmem>>, %arg5: memref<256x256xbf16, #tpu.memory_space<vmem>>, %arg6: memref<1x256xf32, #tpu.memory_space<vmem>>, %arg7: memref<256x16xbf16, #tpu.memory_space<vmem>>, %arg8: memref<1x16xf32, #tpu.memory_space<vmem>>, %arg9: memref<8x256xbf16, #tpu.memory_space<vmem>>, %arg10: memref<1x256xf32, #tpu.memory_space<vmem>>, %arg11: memref<256x256xbf16, #tpu.memory_space<vmem>>, %arg12: memref<1x256xf32, #tpu.memory_space<vmem>>, %arg13: memref<256x16xbf16, #tpu.memory_space<vmem>>, %arg14: memref<1x16xf32, #tpu.memory_space<vmem>>, %arg15: memref<32x32xf32, #tpu.memory_space<vmem>>) attributes {dimension_semantics = [#tpu.dimension_semantics<parallel>], iteration_bounds = array<i64: 3>, scalar_prefetch = 0 : i64, scratch_operands = 0 : i64, tpu.core_type = #tpu.core_type<tc>, window_params = [{transform_indices = @transform_0, window_bounds = array<i64: 32, 16>}, {transform_indices = @transform_1, window_bounds = array<i64: 32, 8>}, {pipeline_mode = #tpu.pipeline_mode<synchronous>, transform_indices = @transform_2, window_bounds = array<i64: 16, 256>}, {pipeline_mode = #tpu.pipeline_mode<synchronous>, transform_indices = @transform_3, window_bounds = array<i64: 1, 256>}, {pipeline_mode = #tpu.pipeline_mode<synchronous>, transform_indices = @transform_4, window_bounds = array<i64: 256, 256>}, {pipeline_mode = #tpu.pipeline_mode<synchronous>, transform_indices = @transform_5, window_bounds = array<i64: 1, 256>}, {pipeline_mode = #tpu.pipeline_mode<synchronous>, transform_indices = @transform_6, window_bounds = array<i64: 256, 16>}, {pipeline_mode = #tpu.pipeline_mode<synchronous>, transform_indices = @transform_7, window_bounds = array<i64: 1, 16>}, {pipeline_mode = #tpu.pipeline_mode<synchronous>, transform_indices = @transform_8, window_bounds = array<i64: 8, 256>}, {pipeline_mode = #tpu.pipeline_mode<synchronous>, transform_indices = @transform_9, window_bounds = array<i64: 1, 256>}, {pipeline_mode = #tpu.pipeline_mode<synchronous>, transform_indices = @transform_10, window_bounds = array<i64: 256, 256>}, {pipeline_mode = #tpu.pipeline_mode<synchronous>, transform_indices = @transform_11, window_bounds = array<i64: 1, 256>}, {pipeline_mode = #tpu.pipeline_mode<synchronous>, transform_indices = @transform_12, window_bounds = array<i64: 256, 16>}, {pipeline_mode = #tpu.pipeline_mode<synchronous>, transform_indices = @transform_13, window_bounds = array<i64: 1, 16>}, {transform_indices = @transform_14, window_bounds = array<i64: 32, 32>}]} {
    %c0 = arith.constant 0 : index
    %c0_0 = arith.constant 0 : index
    %0 = vector.load %arg1[%c0, %c0_0] : memref<32x16xf32, #tpu.memory_space<vmem>>, vector<32x16xf32>
    %1 = arith.truncf %0 : vector<32x16xf32> to vector<32x16xbf16>
    %c0_1 = arith.constant 0 : index
    %c0_2 = arith.constant 0 : index
    %2 = vector.load %arg3[%c0_1, %c0_2] : memref<16x256xbf16, #tpu.memory_space<vmem>>, vector<16x256xbf16>
    %cst = arith.constant dense<0.000000e+00> : vector<32x256xf32>
    %3 = tpu.matmul %1, %2, %cst {dimension_numbers = #tpu.dot_dimension_numbers<[1], [0], [0], [1], [0, 0, 1, 1], [], []>} : vector<32x16xbf16>, vector<16x256xbf16>, vector<32x256xf32> -> vector<32x256xf32>
    %c0_3 = arith.constant 0 : index
    %c0_4 = arith.constant 0 : index
    %4 = vector.load %arg4[%c0_3, %c0_4] : memref<1x256xf32, #tpu.memory_space<vmem>>, vector<1x256xf32>
    %5 = vector.broadcast %4 : vector<1x256xf32> to vector<32x256xf32>
    %6 = arith.addf %3, %5 : vector<32x256xf32>
    %cst_5 = arith.constant 0.000000e+00 : f32
    %7 = vector.broadcast %cst_5 : f32 to vector<32x256xf32>
    %8 = arith.maximumf %6, %7 : vector<32x256xf32>
    %9 = arith.truncf %8 : vector<32x256xf32> to vector<32x256xbf16>
    %c0_6 = arith.constant 0 : index
    %c0_7 = arith.constant 0 : index
    %10 = vector.load %arg5[%c0_6, %c0_7] : memref<256x256xbf16, #tpu.memory_space<vmem>>, vector<256x256xbf16>
    %cst_8 = arith.constant dense<0.000000e+00> : vector<32x256xf32>
    %11 = tpu.matmul %9, %10, %cst_8 {dimension_numbers = #tpu.dot_dimension_numbers<[1], [0], [0], [1], [0, 0, 1, 1], [], []>} : vector<32x256xbf16>, vector<256x256xbf16>, vector<32x256xf32> -> vector<32x256xf32>
    %c0_9 = arith.constant 0 : index
    %c0_10 = arith.constant 0 : index
    %12 = vector.load %arg6[%c0_9, %c0_10] : memref<1x256xf32, #tpu.memory_space<vmem>>, vector<1x256xf32>
    %13 = vector.broadcast %12 : vector<1x256xf32> to vector<32x256xf32>
    %14 = arith.addf %11, %13 : vector<32x256xf32>
    %cst_11 = arith.constant 0.000000e+00 : f32
    %15 = vector.broadcast %cst_11 : f32 to vector<32x256xf32>
    %16 = arith.maximumf %14, %15 : vector<32x256xf32>
    %17 = arith.truncf %16 : vector<32x256xf32> to vector<32x256xbf16>
    %c0_12 = arith.constant 0 : index
    %c0_13 = arith.constant 0 : index
    %18 = vector.load %arg7[%c0_12, %c0_13] : memref<256x16xbf16, #tpu.memory_space<vmem>>, vector<256x16xbf16>
    %cst_14 = arith.constant dense<0.000000e+00> : vector<32x16xf32>
    %19 = tpu.matmul %17, %18, %cst_14 {dimension_numbers = #tpu.dot_dimension_numbers<[1], [0], [0], [1], [0, 0, 1, 1], [], []>} : vector<32x256xbf16>, vector<256x16xbf16>, vector<32x16xf32> -> vector<32x16xf32>
    %c0_15 = arith.constant 0 : index
    %c0_16 = arith.constant 0 : index
    %20 = vector.load %arg8[%c0_15, %c0_16] : memref<1x16xf32, #tpu.memory_space<vmem>>, vector<1x16xf32>
    %21 = vector.broadcast %20 : vector<1x16xf32> to vector<32x16xf32>
    %22 = arith.addf %19, %21 : vector<32x16xf32>
    %23 = vector.extract_strided_slice %22 {offsets = [0, 0], sizes = [32, 8], strides = [1, 1]} : vector<32x16xf32> to vector<32x8xf32>
    %24 = vector.extract_strided_slice %22 {offsets = [0, 8], sizes = [32, 8], strides = [1, 1]} : vector<32x16xf32> to vector<32x8xf32>
    %c0_17 = arith.constant 0 : index
    %c0_18 = arith.constant 0 : index
    %25 = vector.load %arg2[%c0_17, %c0_18] : memref<32x8xf32, #tpu.memory_space<vmem>>, vector<32x8xf32>
    %26 = math.exp %24 : vector<32x8xf32>
    %27 = arith.mulf %25, %26 : vector<32x8xf32>
    %28 = arith.addf %23, %27 : vector<32x8xf32>
    %29 = arith.truncf %28 : vector<32x8xf32> to vector<32x8xbf16>
    %c0_19 = arith.constant 0 : index
    %c0_20 = arith.constant 0 : index
    %30 = vector.load %arg9[%c0_19, %c0_20] : memref<8x256xbf16, #tpu.memory_space<vmem>>, vector<8x256xbf16>
    %cst_21 = arith.constant dense<0.000000e+00> : vector<32x256xf32>
    %31 = tpu.matmul %29, %30, %cst_21 {dimension_numbers = #tpu.dot_dimension_numbers<[1], [0], [0], [1], [0, 0, 1, 1], [], []>} : vector<32x8xbf16>, vector<8x256xbf16>, vector<32x256xf32> -> vector<32x256xf32>
    %c0_22 = arith.constant 0 : index
    %c0_23 = arith.constant 0 : index
    %32 = vector.load %arg10[%c0_22, %c0_23] : memref<1x256xf32, #tpu.memory_space<vmem>>, vector<1x256xf32>
    %33 = vector.broadcast %32 : vector<1x256xf32> to vector<32x256xf32>
    %34 = arith.addf %31, %33 : vector<32x256xf32>
    %cst_24 = arith.constant 0.000000e+00 : f32
    %35 = vector.broadcast %cst_24 : f32 to vector<32x256xf32>
    %36 = arith.maximumf %34, %35 : vector<32x256xf32>
    %37 = arith.truncf %36 : vector<32x256xf32> to vector<32x256xbf16>
    %c0_25 = arith.constant 0 : index
    %c0_26 = arith.constant 0 : index
    %38 = vector.load %arg11[%c0_25, %c0_26] : memref<256x256xbf16, #tpu.memory_space<vmem>>, vector<256x256xbf16>
    %cst_27 = arith.constant dense<0.000000e+00> : vector<32x256xf32>
    %39 = tpu.matmul %37, %38, %cst_27 {dimension_numbers = #tpu.dot_dimension_numbers<[1], [0], [0], [1], [0, 0, 1, 1], [], []>} : vector<32x256xbf16>, vector<256x256xbf16>, vector<32x256xf32> -> vector<32x256xf32>
    %c0_28 = arith.constant 0 : index
    %c0_29 = arith.constant 0 : index
    %40 = vector.load %arg12[%c0_28, %c0_29] : memref<1x256xf32, #tpu.memory_space<vmem>>, vector<1x256xf32>
    %41 = vector.broadcast %40 : vector<1x256xf32> to vector<32x256xf32>
    %42 = arith.addf %39, %41 : vector<32x256xf32>
    %cst_30 = arith.constant 0.000000e+00 : f32
    %43 = vector.broadcast %cst_30 : f32 to vector<32x256xf32>
    %44 = arith.maximumf %42, %43 : vector<32x256xf32>
    %45 = arith.truncf %44 : vector<32x256xf32> to vector<32x256xbf16>
    %c0_31 = arith.constant 0 : index
    %c0_32 = arith.constant 0 : index
    %46 = vector.load %arg13[%c0_31, %c0_32] : memref<256x16xbf16, #tpu.memory_space<vmem>>, vector<256x16xbf16>
    %cst_33 = arith.constant dense<0.000000e+00> : vector<32x16xf32>
    %47 = tpu.matmul %45, %46, %cst_33 {dimension_numbers = #tpu.dot_dimension_numbers<[1], [0], [0], [1], [0, 0, 1, 1], [], []>} : vector<32x256xbf16>, vector<256x16xbf16>, vector<32x16xf32> -> vector<32x16xf32>
    %c0_34 = arith.constant 0 : index
    %c0_35 = arith.constant 0 : index
    %48 = vector.load %arg14[%c0_34, %c0_35] : memref<1x16xf32, #tpu.memory_space<vmem>>, vector<1x16xf32>
    %49 = vector.broadcast %48 : vector<1x16xf32> to vector<32x16xf32>
    %50 = arith.addf %47, %49 : vector<32x16xf32>
    %cst_36 = arith.constant 0.000000e+00 : f32
    %cst_37 = arith.constant 1.200000e+02 : f32
    %51 = arith.subf %cst_36, %cst_37 : f32
    %cst_38 = arith.constant 1.200000e+02 : f32
    %52 = vector.broadcast %51 : f32 to vector<32x16xf32>
    %53 = arith.maximumf %52, %50 : vector<32x16xf32>
    %54 = vector.broadcast %cst_38 : f32 to vector<32x16xf32>
    %55 = arith.minimumf %54, %53 : vector<32x16xf32>
    %56 = tpu.concatenate %55, %22 in 1 : vector<32x16xf32>, vector<32x16xf32> -> vector<32x32xf32>
    %c0_39 = arith.constant 0 : index
    %c0_40 = arith.constant 0 : index
    %57 = vector.load %arg15[%c0_39, %c0_40] : memref<32x32xf32, #tpu.memory_space<vmem>>, vector<32x32xf32>
    tpu.vector_store %arg15[%c0_39, %c0_40], %56 {strides = array<i32>} : memref<32x32xf32, #tpu.memory_space<vmem>>, vector<32x32xf32>,
    return
  }
  func.func @transform_0(%arg0: i32) -> (i32, i32) {
    %c0_i32 = arith.constant 0 : i32
    %c0_i32_0 = arith.constant 0 : i32
    return %arg0, %c0_i32 : i32, i32
  }
  func.func @transform_1(%arg0: i32) -> (i32, i32) {
    %c0_i32 = arith.constant 0 : i32
    %c0_i32_0 = arith.constant 0 : i32
    return %arg0, %c0_i32 : i32, i32
  }
  func.func @transform_2(%arg0: i32) -> (i32, i32) {
    %c0_i32 = arith.constant 0 : i32
    %c0_i32_0 = arith.constant 0 : i32
    %c0_i32_1 = arith.constant 0 : i32
    return %c0_i32, %c0_i32_0 : i32, i32
  }
  func.func @transform_3(%arg0: i32) -> (i32, i32) {
    %c0_i32 = arith.constant 0 : i32
    %c0_i32_0 = arith.constant 0 : i32
    %c0_i32_1 = arith.constant 0 : i32
    return %c0_i32, %c0_i32_0 : i32, i32
  }
  func.func @transform_4(%arg0: i32) -> (i32, i32) {
    %c0_i32 = arith.constant 0 : i32
    %c0_i32_0 = arith.constant 0 : i32
    %c0_i32_1 = arith.constant 0 : i32
    return %c0_i32, %c0_i32_0 : i32, i32
  }
  func.func @transform_5(%arg0: i32) -> (i32, i32) {
    %c0_i32 = arith.constant 0 : i32
    %c0_i32_0 = arith.constant 0 : i32
    %c0_i32_1 = arith.constant 0 : i32
    return %c0_i32, %c0_i32_0 : i32, i32
  }
  func.func @transform_6(%arg0: i32) -> (i32, i32) {
    %c0_i32 = arith.constant 0 : i32
    %c0_i32_0 = arith.constant 0 : i32
    %c0_i32_1 = arith.constant 0 : i32
    return %c0_i32, %c0_i32_0 : i32, i32
  }
  func.func @transform_7(%arg0: i32) -> (i32, i32) {
    %c0_i32 = arith.constant 0 : i32
    %c0_i32_0 = arith.constant 0 : i32
    %c0_i32_1 = arith.constant 0 : i32
    return %c0_i32, %c0_i32_0 : i32, i32
  }
  func.func @transform_8(%arg0: i32) -> (i32, i32) {
    %c0_i32 = arith.constant 0 : i32
    %c0_i32_0 = arith.constant 0 : i32
    %c0_i32_1 = arith.constant 0 : i32
    return %c0_i32, %c0_i32_0 : i32, i32
  }
  func.func @transform_9(%arg0: i32) -> (i32, i32) {
    %c0_i32 = arith.constant 0 : i32
    %c0_i32_0 = arith.constant 0 : i32
    %c0_i32_1 = arith.constant 0 : i32
    return %c0_i32, %c0_i32_0 : i32, i32
  }
  func.func @transform_10(%arg0: i32) -> (i32, i32) {
    %c0_i32 = arith.constant 0 : i32
    %c0_i32_0 = arith.constant 0 : i32
    %c0_i32_1 = arith.constant 0 : i32
    return %c0_i32, %c0_i32_0 : i32, i32
  }
  func.func @transform_11(%arg0: i32) -> (i32, i32) {
    %c0_i32 = arith.constant 0 : i32
    %c0_i32_0 = arith.constant 0 : i32
    %c0_i32_1 = arith.constant 0 : i32
    return %c0_i32, %c0_i32_0 : i32, i32
  }
  func.func @transform_12(%arg0: i32) -> (i32, i32) {
    %c0_i32 = arith.constant 0 : i32
    %c0_i32_0 = arith.constant 0 : i32
    %c0_i32_1 = arith.constant 0 : i32
    return %c0_i32, %c0_i32_0 : i32, i32
  }
  func.func @transform_13(%arg0: i32) -> (i32, i32) {
    %c0_i32 = arith.constant 0 : i32
    %c0_i32_0 = arith.constant 0 : i32
    %c0_i32_1 = arith.constant 0 : i32
    return %c0_i32, %c0_i32_0 : i32, i32
  }
  func.func @transform_14(%arg0: i32) -> (i32, i32) {
    %c0_i32 = arith.constant 0 : i32
    %c0_i32_0 = arith.constant 0 : i32
    return %arg0, %c0_i32 : i32, i32
  }
}

</mosaic_0001>

<llo_original>
// kernel: tpu_custom_call.1
$region0: #{tpu_custom_call.1}
  #allocation0 [shape = 'u32[]', space=smem, size = 0x4, offset = 0x4, fixed_abs, tag = 'smem constant byte address 0x4 - core index']
  #allocation1 [shape = 'u32[144,128]{1,0:T(1,128)}', space=vmem, size = 0x12000, scoped, tag = 'internal scratch']
  %s0 = inlined_call_operand.vmem [shape: f32[96,16], index: 0, kind: input, shape index: {}]
  %s1 = inlined_call_operand.vmem [shape: f32[96,8], index: 1, kind: input, shape index: {}]
  %s2 = inlined_call_operand.hbm [shape: bf16[16,256], index: 2, kind: input, shape index: {}]
  %s3 = inlined_call_operand.vmem [shape: f32[1,256], index: 3, kind: input, shape index: {}]
  %s4 = inlined_call_operand.vmem [shape: bf16[256,256], index: 4, kind: input, shape index: {}]
  %s5 = inlined_call_operand.vmem [shape: f32[1,256], index: 5, kind: input, shape index: {}]
  %s6 = inlined_call_operand.vmem [shape: bf16[256,16], index: 6, kind: input, shape index: {}]
  %s7 = inlined_call_operand.hbm [shape: f32[1,16], index: 7, kind: input, shape index: {}]
  %s8 = inlined_call_operand.hbm [shape: bf16[8,256], index: 8, kind: input, shape index: {}]
  %s9 = inlined_call_operand.vmem [shape: f32[1,256], index: 9, kind: input, shape index: {}]
  %s10 = inlined_call_operand.vmem [shape: bf16[256,256], index: 10, kind: input, shape index: {}]
  %s11 = inlined_call_operand.vmem [shape: f32[1,256], index: 11, kind: input, shape index: {}]
  %s12 = inlined_call_operand.vmem [shape: bf16[256,16], index: 12, kind: input, shape index: {}]
  %s13 = inlined_call_operand.vmem [shape: f32[1,16], index: 13, kind: input, shape index: {}]
  %s14 = inlined_call_operand.vmem [shape: f32[96,32], index: 14, kind: output, shape index: {}]
  %s15 = sld [smem:[#allocation0]]
  $region101: #{tpu_custom_call.1} parent=0
    _
  %s17 = ssub.s32 1, %s15
  %s18 = scalar_select 0, %s17, %s15
  $region1: #{tpu_custom_call.1} parent=0
    #allocation2 [shape = 'u8[8192]{0}', space=vmem, size = 0x2000, scoped, tag = 'input window, operand 2, single buffered']
    #allocation3 [shape = 's32[2]{0}', space=sflag, size = 0x8, scoped, tag = 'scoped memory for tpu_custom_call.1']
    #allocation4 [shape = 'u8[512]{0}', space=vmem, size = 0x400, scoped, tag = 'input window, operand 7, single buffered']
    #allocation5 [shape = 's32[1]{0}', space=sflag, size = 0x4, scoped, tag = 'scoped memory for tpu_custom_call.1']
    #allocation6 [shape = 'u8[4096]{0}', space=vmem, size = 0x1000, scoped, tag = 'input window, operand 8, single buffered']
    %19 = vsyncpa [#allocation3], 0
    %20 = vsyncpa [#allocation5], 0
    loop: start=0, step=1, limit=5
    $region2: #{tpu_custom_call.1} parent=1 // loop_pre_header
      _
    $region3: #{tpu_custom_call.1} parent=1 // loop_header
      %s22 = sphi 0, %s26
      %p23 = scmp.ge.s32.totalorder %s22, 5
      %s32 = sphi 0, %s34
      %s35 = sphi 0, %s32
      %s36 = sphi 0, %s35
      %s52 = sphi 0, %s36
      %s58 = sphi 0, %s60
      %s61 = sphi 0, %s58
      %s62 = sphi 0, %s61
      %s78 = sphi 0, %s62
      %s82 = sphi 0, %s82
      %s84 = sphi 0, %s82
      %s85 = sphi 0, %s84
      %s99 = sphi 0, %s85
      %s103 = sphi 0, %s103
      %s105 = sphi 0, %s103
      %s106 = sphi 0, %s105
      %s120 = sphi 0, %s106
      %s124 = sphi 0, %s124
      %s126 = sphi 0, %s124
      %s127 = sphi 0, %s126
      %s141 = sphi 0, %s127
      %s145 = sphi 0, %s145
      %s147 = sphi 0, %s145
      %s148 = sphi 0, %s147
      %s162 = sphi 0, %s148
      %s166 = sphi 0, %s166
      %s168 = sphi 0, %s166
      %s169 = sphi 0, %s168
      %s183 = sphi 0, %s169
      %s187 = sphi 0, %s187
      %s189 = sphi 0, %s187
      %s190 = sphi 0, %s189
      %s204 = sphi 0, %s190
      %s208 = sphi 0, %s208
      %s210 = sphi 0, %s208
      %s211 = sphi 0, %s210
      %s225 = sphi 0, %s211
      %s229 = sphi 0, %s229
      %s231 = sphi 0, %s229
      %s232 = sphi 0, %s231
      %s246 = sphi 0, %s232
      %s250 = sphi 0, %s250
      %s252 = sphi 0, %s250
      %s253 = sphi 0, %s252
      %s267 = sphi 0, %s253
      %s271 = sphi 0, %s271
      %s273 = sphi 0, %s271
      %s274 = sphi 0, %s273
      %s288 = sphi 0, %s274
      %s292 = sphi 0, %s292
      %s294 = sphi 0, %s292
      %s295 = sphi 0, %s294
      %s309 = sphi 0, %s295
      %s313 = sphi 0, %s313
      %s315 = sphi 0, %s313
      %s316 = sphi 0, %s315
      %s330 = sphi 0, %s316
      %s336 = sphi 0, %s338
      %s339 = sphi 0, %s336
      %s340 = sphi 0, %s339
      %s356 = sphi 0, %s340
    $region4: #{tpu_custom_call.1} parent=1 // loop_header_branch
      %25 = sbr.rel (%p23) target = $region8
    $region5: #{tpu_custom_call.1} parent=1 // loop_body
      %s27 = ssub.s32 %s22, 1
      %s28 = ssub.s32 %s22, 2
      %s29 = sadd.s32 %s22, 1
      %s30 = ssub.s32 %s22, %s29
      %p31 = scmp.eq.s32.totalorder %s30, 0
      %s33 = sadd.s32 %s32, 1
      %s34 = scalar_select %p31, %s32, %s33
      %p37 = pneg %p31
      %p38 = scmp.eq.s32.totalorder %s22, 2
      %p39 = por %p37, %p38
      %p40 = scmp.ne.s32.totalorder %s32, %s35
      %p41 = scmp.eq.s32.totalorder %s22, 0
      %p42 = por %p40, %p41
      %p43 = scmp.ne.s32.totalorder %s32, %s35
      %p44 = scmp.eq.s32.totalorder %s27, 2
      %p45 = por %p43, %p44
      %p46 = scmp.ne.s32.totalorder %s35, %s36
      %p47 = scmp.eq.s32.totalorder %s27, 0
      %p48 = por %p46, %p47
      %p49 = scmp.ne.s32.totalorder %s35, %s36
      %p50 = scmp.eq.s32.totalorder %s28, 2
      %p51 = por %p49, %p50
      %p53 = scmp.ne.s32.totalorder %s36, %s52
      %p54 = scmp.eq.s32.totalorder %s28, 0
      %p55 = por %p53, %p54
      %s56 = ssub.s32 %s22, %s29
      %p57 = scmp.eq.s32.totalorder %s56, 0
      %s59 = sadd.s32 %s58, 1
      %s60 = scalar_select %p57, %s58, %s59
      %p63 = pneg %p57
      %p64 = scmp.eq.s32.totalorder %s22, 2
      %p65 = por %p63, %p64
      %p66 = scmp.ne.s32.totalorder %s58, %s61
      %p67 = scmp.eq.s32.totalorder %s22, 0
      %p68 = por %p66, %p67
      %p69 = scmp.ne.s32.totalorder %s58, %s61
      %p70 = scmp.eq.s32.totalorder %s27, 2
      %p71 = por %p69, %p70
      %p72 = scmp.ne.s32.totalorder %s61, %s62
      %p73 = scmp.eq.s32.totalorder %s27, 0
      %p74 = por %p72, %p73
      %p75 = scmp.ne.s32.totalorder %s61, %s62
      %p76 = scmp.eq.s32.totalorder %s28, 2
      %p77 = por %p75, %p76
      %p79 = scmp.ne.s32.totalorder %s62, %s78
      %p80 = scmp.eq.s32.totalorder %s28, 0
      %p81 = por %p79, %p80
      %s83 = sadd.s32 %s82, 1
      %p86 = scmp.eq.s32.totalorder %s22, 2
      %p87 = scmp.ne.s32.totalorder %s82, %s84
      %p88 = scmp.eq.s32.totalorder %s22, 0
      %p89 = por %p87, %p88
      %p90 = scmp.ne.s32.totalorder %s82, %s84
      %p91 = scmp.eq.s32.totalorder %s27, 2
      %p92 = por %p90, %p91
      %p93 = scmp.ne.s32.totalorder %s84, %s85
      %p94 = scmp.eq.s32.totalorder %s27, 0
      %p95 = por %p93, %p94
      %p96 = scmp.ne.s32.totalorder %s84, %s85
      %p97 = scmp.eq.s32.totalorder %s28, 2
      %p98 = por %p96, %p97
      %p100 = scmp.ne.s32.totalorder %s85, %s99
      %p101 = scmp.eq.s32.totalorder %s28, 0
      %p102 = por %p100, %p101
      %s104 = sadd.s32 %s103, 1
      %p107 = scmp.eq.s32.totalorder %s22, 2
      %p108 = scmp.ne.s32.totalorder %s103, %s105
      %p109 = scmp.eq.s32.totalorder %s22, 0
      %p110 = por %p108, %p109
      %p111 = scmp.ne.s32.totalorder %s103, %s105
      %p112 = scmp.eq.s32.totalorder %s27, 2
      %p113 = por %p111, %p112
      %p114 = scmp.ne.s32.totalorder %s105, %s106
      %p115 = scmp.eq.s32.totalorder %s27, 0
      %p116 = por %p114, %p115
      %p117 = scmp.ne.s32.totalorder %s105, %s106
      %p118 = scmp.eq.s32.totalorder %s28, 2
      %p119 = por %p117, %p118
      %p121 = scmp.ne.s32.totalorder %s106, %s120
      %p122 = scmp.eq.s32.totalorder %s28, 0
      %p123 = por %p121, %p122
      %s125 = sadd.s32 %s124, 1
      %p128 = scmp.eq.s32.totalorder %s22, 2
      %p129 = scmp.ne.s32.totalorder %s124, %s126
      %p130 = scmp.eq.s32.totalorder %s22, 0
      %p131 = por %p129, %p130
      %p132 = scmp.ne.s32.totalorder %s124, %s126
      %p133 = scmp.eq.s32.totalorder %s27, 2
      %p134 = por %p132, %p133
      %p135 = scmp.ne.s32.totalorder %s126, %s127
      %p136 = scmp.eq.s32.totalorder %s27, 0
      %p137 = por %p135, %p136
      %p138 = scmp.ne.s32.totalorder %s126, %s127
      %p139 = scmp.eq.s32.totalorder %s28, 2
      %p140 = por %p138, %p139
      %p142 = scmp.ne.s32.totalorder %s127, %s141
      %p143 = scmp.eq.s32.totalorder %s28, 0
      %p144 = por %p142, %p143
      %s146 = sadd.s32 %s145, 1
      %p149 = scmp.eq.s32.totalorder %s22, 2
      %p150 = scmp.ne.s32.totalorder %s145, %s147
      %p151 = scmp.eq.s32.totalorder %s22, 0
      %p152 = por %p150, %p151
      %p153 = scmp.ne.s32.totalorder %s145, %s147
      %p154 = scmp.eq.s32.totalorder %s27, 2
      %p155 = por %p153, %p154
      %p156 = scmp.ne.s32.totalorder %s147, %s148
      %p157 = scmp.eq.s32.totalorder %s27, 0
      %p158 = por %p156, %p157
      %p159 = scmp.ne.s32.totalorder %s147, %s148
      %p160 = scmp.eq.s32.totalorder %s28, 2
      %p161 = por %p159, %p160
      %p163 = scmp.ne.s32.totalorder %s148, %s162
      %p164 = scmp.eq.s32.totalorder %s28, 0
      %p165 = por %p163, %p164
      %s167 = sadd.s32 %s166, 1
      %p170 = scmp.eq.s32.totalorder %s22, 2
      %p171 = scmp.ne.s32.totalorder %s166, %s168
      %p172 = scmp.eq.s32.totalorder %s22, 0
      %p173 = por %p171, %p172
      %p174 = scmp.ne.s32.totalorder %s166, %s168
      %p175 = scmp.eq.s32.totalorder %s27, 2
      %p176 = por %p174, %p175
      %p177 = scmp.ne.s32.totalorder %s168, %s169
      %p178 = scmp.eq.s32.totalorder %s27, 0
      %p179 = por %p177, %p178
      %p180 = scmp.ne.s32.totalorder %s168, %s169
      %p181 = scmp.eq.s32.totalorder %s28, 2
      %p182 = por %p180, %p181
      %p184 = scmp.ne.s32.totalorder %s169, %s183
      %p185 = scmp.eq.s32.totalorder %s28, 0
      %p186 = por %p184, %p185
      %s188 = sadd.s32 %s187, 1
      %p191 = scmp.eq.s32.totalorder %s22, 2
      %p192 = scmp.ne.s32.totalorder %s187, %s189
      %p193 = scmp.eq.s32.totalorder %s22, 0
      %p194 = por %p192, %p193
      %p195 = scmp.ne.s32.totalorder %s187, %s189
      %p196 = scmp.eq.s32.totalorder %s27, 2
      %p197 = por %p195, %p196
      %p198 = scmp.ne.s32.totalorder %s189, %s190
      %p199 = scmp.eq.s32.totalorder %s27, 0
      %p200 = por %p198, %p199
      %p201 = scmp.ne.s32.totalorder %s189, %s190
      %p202 = scmp.eq.s32.totalorder %s28, 2
      %p203 = por %p201, %p202
      %p205 = scmp.ne.s32.totalorder %s190, %s204
      %p206 = scmp.eq.s32.totalorder %s28, 0
      %p207 = por %p205, %p206
      %s209 = sadd.s32 %s208, 1
      %p212 = scmp.eq.s32.totalorder %s22, 2
      %p213 = scmp.ne.s32.totalorder %s208, %s210
      %p214 = scmp.eq.s32.totalorder %s22, 0
      %p215 = por %p213, %p214
      %p216 = scmp.ne.s32.totalorder %s208, %s210
      %p217 = scmp.eq.s32.totalorder %s27, 2
      %p218 = por %p216, %p217
      %p219 = scmp.ne.s32.totalorder %s210, %s211
      %p220 = scmp.eq.s32.totalorder %s27, 0
      %p221 = por %p219, %p220
      %p222 = scmp.ne.s32.totalorder %s210, %s211
      %p223 = scmp.eq.s32.totalorder %s28, 2
      %p224 = por %p222, %p223
      %p226 = scmp.ne.s32.totalorder %s211, %s225
      %p227 = scmp.eq.s32.totalorder %s28, 0
      %p228 = por %p226, %p227
      %s230 = sadd.s32 %s229, 1
      %p233 = scmp.eq.s32.totalorder %s22, 2
      %p234 = scmp.ne.s32.totalorder %s229, %s231
      %p235 = scmp.eq.s32.totalorder %s22, 0
      %p236 = por %p234, %p235
      %p237 = scmp.ne.s32.totalorder %s229, %s231
      %p238 = scmp.eq.s32.totalorder %s27, 2
      %p239 = por %p237, %p238
      %p240 = scmp.ne.s32.totalorder %s231, %s232
      %p241 = scmp.eq.s32.totalorder %s27, 0
      %p242 = por %p240, %p241
      %p243 = scmp.ne.s32.totalorder %s231, %s232
      %p244 = scmp.eq.s32.totalorder %s28, 2
      %p245 = por %p243, %p244
      %p247 = scmp.ne.s32.totalorder %s232, %s246
      %p248 = scmp.eq.s32.totalorder %s28, 0
      %p249 = por %p247, %p248
      %s251 = sadd.s32 %s250, 1
      %p254 = scmp.eq.s32.totalorder %s22, 2
      %p255 = scmp.ne.s32.totalorder %s250, %s252
      %p256 = scmp.eq.s32.totalorder %s22, 0
      %p257 = por %p255, %p256
      %p258 = scmp.ne.s32.totalorder %s250, %s252
      %p259 = scmp.eq.s32.totalorder %s27, 2
      %p260 = por %p258, %p259
      %p261 = scmp.ne.s32.totalorder %s252, %s253
      %p262 = scmp.eq.s32.totalorder %s27, 0
      %p263 = por %p261, %p262
      %p264 = scmp.ne.s32.totalorder %s252, %s253
      %p265 = scmp.eq.s32.totalorder %s28, 2
      %p266 = por %p264, %p265
      %p268 = scmp.ne.s32.totalorder %s253, %s267
      %p269 = scmp.eq.s32.totalorder %s28, 0
      %p270 = por %p268, %p269
      %s272 = sadd.s32 %s271, 1
      %p275 = scmp.eq.s32.totalorder %s22, 2
      %p276 = scmp.ne.s32.totalorder %s271, %s273
      %p277 = scmp.eq.s32.totalorder %s22, 0
      %p278 = por %p276, %p277
      %p279 = scmp.ne.s32.totalorder %s271, %s273
      %p280 = scmp.eq.s32.totalorder %s27, 2
      %p281 = por %p279, %p280
      %p282 = scmp.ne.s32.totalorder %s273, %s274
      %p283 = scmp.eq.s32.totalorder %s27, 0
      %p284 = por %p282, %p283
      %p285 = scmp.ne.s32.totalorder %s273, %s274
      %p286 = scmp.eq.s32.totalorder %s28, 2
      %p287 = por %p285, %p286
      %p289 = scmp.ne.s32.totalorder %s274, %s288
      %p290 = scmp.eq.s32.totalorder %s28, 0
      %p291 = por %p289, %p290
      %s293 = sadd.s32 %s292, 1
      %p296 = scmp.eq.s32.totalorder %s22, 2
      %p297 = scmp.ne.s32.totalorder %s292, %s294
      %p298 = scmp.eq.s32.totalorder %s22, 0
      %p299 = por %p297, %p298
      %p300 = scmp.ne.s32.totalorder %s292, %s294
      %p301 = scmp.eq.s32.totalorder %s27, 2
      %p302 = por %p300, %p301
      %p303 = scmp.ne.s32.totalorder %s294, %s295
      %p304 = scmp.eq.s32.totalorder %s27, 0
      %p305 = por %p303, %p304
      %p306 = scmp.ne.s32.totalorder %s294, %s295
      %p307 = scmp.eq.s32.totalorder %s28, 2
      %p308 = por %p306, %p307
      %p310 = scmp.ne.s32.totalorder %s295, %s309
      %p311 = scmp.eq.s32.totalorder %s28, 0
      %p312 = por %p310, %p311
      %s314 = sadd.s32 %s313, 1
      %p317 = scmp.eq.s32.totalorder %s22, 2
      %p318 = scmp.ne.s32.totalorder %s313, %s315
      %p319 = scmp.eq.s32.totalorder %s22, 0
      %p320 = por %p318, %p319
      %p321 = scmp.ne.s32.totalorder %s313, %s315
      %p322 = scmp.eq.s32.totalorder %s27, 2
      %p323 = por %p321, %p322
      %p324 = scmp.ne.s32.totalorder %s315, %s316
      %p325 = scmp.eq.s32.totalorder %s27, 0
      %p326 = por %p324, %p325
      %p327 = scmp.ne.s32.totalorder %s315, %s316
      %p328 = scmp.eq.s32.totalorder %s28, 2
      %p329 = por %p327, %p328
      %p331 = scmp.ne.s32.totalorder %s316, %s330
      %p332 = scmp.eq.s32.totalorder %s28, 0
      %p333 = por %p331, %p332
      %s334 = ssub.s32 %s22, %s29
      %p335 = scmp.eq.s32.totalorder %s334, 0
      %s337 = sadd.s32 %s336, 1
      %s338 = scalar_select %p335, %s336, %s337
      %p341 = pneg %p335
      %p342 = scmp.eq.s32.totalorder %s22, 2
      %p343 = por %p341, %p342
      %p344 = scmp.ne.s32.totalorder %s336, %s339
      %p345 = scmp.eq.s32.totalorder %s22, 0
      %p346 = por %p344, %p345
      %p347 = scmp.ne.s32.totalorder %s336, %s339
      %p348 = scmp.eq.s32.totalorder %s27, 2
      %p349 = por %p347, %p348
      %p350 = scmp.ne.s32.totalorder %s339, %s340
      %p351 = scmp.eq.s32.totalorder %s27, 0
      %p352 = por %p350, %p351
      %p353 = scmp.ne.s32.totalorder %s339, %s340
      %p354 = scmp.eq.s32.totalorder %s28, 2
      %p355 = por %p353, %p354
      %p357 = scmp.ne.s32.totalorder %s340, %s356
      %p358 = scmp.eq.s32.totalorder %s28, 0
      %p359 = por %p357, %p358
      %p360 = scmp.le.s32.totalorder 1, %s22
      %p361 = scmp.lt.s32.totalorder %s22, 4
      %p362 = pnand %p360, %p361
      %p363 = pneg %p362
      // Predicated region
      $region9: #{tpu_custom_call.1} parent=5 // pred_check
        _
      $region10: #{tpu_custom_call.1} parent=5 // pred_check_branch
        %365 = sbr.rel (%p362) target = $region12
      $region11: #{tpu_custom_call.1} parent=5 // pred_region
        %s366 = ssub.s32 %s22, 1
        // Predicated region
        $region13: #{tpu_custom_call.1} parent=11 // pred_check
          %p367 = pneg %p95
        $region14: #{tpu_custom_call.1} parent=11 // pred_check_branch
          %369 = sbr.rel (%p367) target = $region16
        $region15: #{tpu_custom_call.1} parent=11 // pred_region
          %s371 = ssub.s32 256, 256
          %372 = vsyncadd [#allocation3], %s371
          %s373 = sshll.u32 [#allocation2], 4
          %s374 = int_to_ptr.vmem [resolvable:$true] %s373
          %379 = dma.hbm_to_vmem [thread:$0]  %s2, 256, %s374, [#allocation3], 128, 128, 8
        $region16: #{tpu_custom_call.1} parent=11 // pred_fallthru
          _
        // Predicated region
        $region17: #{tpu_custom_call.1} parent=11 // pred_check
          %p380 = pneg %p116
        $region18: #{tpu_custom_call.1} parent=11 // pred_check_branch
          %382 = sbr.rel (%p380) target = $region20
        $region19: #{tpu_custom_call.1} parent=11 // pred_region
          _
        $region20: #{tpu_custom_call.1} parent=11 // pred_fallthru
          _
        // Predicated region
        $region21: #{tpu_custom_call.1} parent=11 // pred_check
          %p383 = pneg %p137
        $region22: #{tpu_custom_call.1} parent=11 // pred_check_branch
          %385 = sbr.rel (%p383) target = $region24
        $region23: #{tpu_custom_call.1} parent=11 // pred_region
          _
        $region24: #{tpu_custom_call.1} parent=11 // pred_fallthru
          _
        // Predicated region
        $region25: #{tpu_custom_call.1} parent=11 // pred_check
          %p386 = pneg %p158
        $region26: #{tpu_custom_call.1} parent=11 // pred_check_branch
          %388 = sbr.rel (%p386) target = $region28
        $region27: #{tpu_custom_call.1} parent=11 // pred_region
          _
        $region28: #{tpu_custom_call.1} parent=11 // pred_fallthru
          _
        // Predicated region
        $region29: #{tpu_custom_call.1} parent=11 // pred_check
          %p389 = pneg %p179
        $region30: #{tpu_custom_call.1} parent=11 // pred_check_branch
          %391 = sbr.rel (%p389) target = $region32
        $region31: #{tpu_custom_call.1} parent=11 // pred_region
          _
        $region32: #{tpu_custom_call.1} parent=11 // pred_fallthru
          _
        // Predicated region
        $region33: #{tpu_custom_call.1} parent=11 // pred_check
          %p392 = pneg %p200
        $region34: #{tpu_custom_call.1} parent=11 // pred_check_branch
          %394 = sbr.rel (%p392) target = $region36
        $region35: #{tpu_custom_call.1} parent=11 // pred_region
          %s396 = ssub.s32 16, 16
          %397 = vsyncadd [#allocation5], %s396
          %s399 = sshll.u32 [#allocation4], 4
          %s400 = int_to_ptr.vmem [resolvable:$true] %s399
          %402 = dma.hbm_to_vmem [thread:$0]  %s7, 16, %s400, [#allocation5]
        $region36: #{tpu_custom_call.1} parent=11 // pred_fallthru
          _
        // Predicated region
        $region37: #{tpu_custom_call.1} parent=11 // pred_check
          %p403 = pneg %p221
        $region38: #{tpu_custom_call.1} parent=11 // pred_check_branch
          %405 = sbr.rel (%p403) target = $region40
        $region39: #{tpu_custom_call.1} parent=11 // pred_region
          %s407 = ssub.s32 128, 128
          %408 = vsyncadd [#allocation5], %s407
          %s410 = sshll.u32 [#allocation6], 4
          %s411 = int_to_ptr.vmem [resolvable:$true] %s410
          %413 = dma.hbm_to_vmem [thread:$0]  %s8, 128, %s411, [#allocation5]
        $region40: #{tpu_custom_call.1} parent=11 // pred_fallthru
          _
        // Predicated region
        $region41: #{tpu_custom_call.1} parent=11 // pred_check
          %p414 = pneg %p242
        $region42: #{tpu_custom_call.1} parent=11 // pred_check_branch
          %416 = sbr.rel (%p414) target = $region44
        $region43: #{tpu_custom_call.1} parent=11 // pred_region
          _
        $region44: #{tpu_custom_call.1} parent=11 // pred_fallthru
          _
        // Predicated region
        $region45: #{tpu_custom_call.1} parent=11 // pred_check
          %p417 = pneg %p263
        $region46: #{tpu_custom_call.1} parent=11 // pred_check_branch
          %419 = sbr.rel (%p417) target = $region48
        $region47: #{tpu_custom_call.1} parent=11 // pred_region
          _
        $region48: #{tpu_custom_call.1} parent=11 // pred_fallthru
          _
        // Predicated region
        $region49: #{tpu_custom_call.1} parent=11 // pred_check
          %p420 = pneg %p284
        $region50: #{tpu_custom_call.1} parent=11 // pred_check_branch
          %422 = sbr.rel (%p420) target = $region52
        $region51: #{tpu_custom_call.1} parent=11 // pred_region
          _
        $region52: #{tpu_custom_call.1} parent=11 // pred_fallthru
          _
        // Predicated region
        $region53: #{tpu_custom_call.1} parent=11 // pred_check
          %p423 = pneg %p305
        $region54: #{tpu_custom_call.1} parent=11 // pred_check_branch
          %425 = sbr.rel (%p423) target = $region56
        $region55: #{tpu_custom_call.1} parent=11 // pred_region
          _
        $region56: #{tpu_custom_call.1} parent=11 // pred_fallthru
          _
        // Predicated region
        $region57: #{tpu_custom_call.1} parent=11 // pred_check
          %p426 = pneg %p326
        $region58: #{tpu_custom_call.1} parent=11 // pred_check_branch
          %428 = sbr.rel (%p426) target = $region60
        $region59: #{tpu_custom_call.1} parent=11 // pred_region
          _
        $region60: #{tpu_custom_call.1} parent=11 // pred_fallthru
          _
      $region12: #{tpu_custom_call.1} parent=5 // pred_fallthru
        _
      %p429 = scmp.lt.s32.totalorder %s22, 3
      // Predicated region
      $region61: #{tpu_custom_call.1} parent=5 // pred_check
        %p430 = pneg %p429
      $region62: #{tpu_custom_call.1} parent=5 // pred_check_branch
        %432 = sbr.rel (%p430) target = $region64
      $region63: #{tpu_custom_call.1} parent=5 // pred_region
        // Predicated region
        $region65: #{tpu_custom_call.1} parent=63 // pred_check
          %p433 = pneg %p42
        $region66: #{tpu_custom_call.1} parent=63 // pred_check_branch
          %435 = sbr.rel (%p433) target = $region68
        $region67: #{tpu_custom_call.1} parent=63 // pred_region
          %s436 = smul.u32 4, %s22
          %p437 = scmp.lt.s32.totalorder %s436, 11
          %s438 = scalar_select %p437, %s436, 11
          %s439 = smul.addr %s438, 8
          %s440 = scalar_lea.vmem %s0, %s439
          %s441 = smul.u32 4, %s22
        $region68: #{tpu_custom_call.1} parent=63 // pred_fallthru
          _
        // Predicated region
        $region69: #{tpu_custom_call.1} parent=63 // pred_check
          %p442 = pneg %p68
        $region70: #{tpu_custom_call.1} parent=63 // pred_check_branch
          %444 = sbr.rel (%p442) target = $region72
        $region71: #{tpu_custom_call.1} parent=63 // pred_region
          %s445 = smul.u32 4, %s22
          %p446 = scmp.lt.s32.totalorder %s445, 11
          %s447 = scalar_select %p446, %s445, 11
          %s448 = smul.addr %s447, 8
          %s449 = scalar_lea.vmem %s1, %s448
          %s450 = smul.u32 4, %s22
        $region72: #{tpu_custom_call.1} parent=63 // pred_fallthru
          _
      $region64: #{tpu_custom_call.1} parent=5 // pred_fallthru
        _
      %p451 = scmp.le.s32.totalorder 1, %s22
      %p452 = scmp.lt.s32.totalorder %s22, 4
      %p453 = pnand %p451, %p452
      %p454 = pneg %p453
      // Predicated region
      $region73: #{tpu_custom_call.1} parent=5 // pred_check
        _
      $region74: #{tpu_custom_call.1} parent=5 // pred_check_branch
        %456 = sbr.rel (%p453) target = $region76
      $region75: #{tpu_custom_call.1} parent=5 // pred_region
        %s457 = ssub.s32 %s22, 1
        // Predicated region
        $region77: #{tpu_custom_call.1} parent=75 // pred_check
          %p458 = pneg %p95
        $region78: #{tpu_custom_call.1} parent=75 // pred_check_branch
          %460 = sbr.rel (%p458) target = $region80
        $region79: #{tpu_custom_call.1} parent=75 // pred_region
          %461 = dma.done [#allocation3], 256
        $region80: #{tpu_custom_call.1} parent=75 // pred_fallthru
          _
        // Predicated region
        $region81: #{tpu_custom_call.1} parent=75 // pred_check
          %p462 = pneg %p200
        $region82: #{tpu_custom_call.1} parent=75 // pred_check_branch
          %464 = sbr.rel (%p462) target = $region84
        $region83: #{tpu_custom_call.1} parent=75 // pred_region
          %465 = dma.done [#allocation5], 16
        $region84: #{tpu_custom_call.1} parent=75 // pred_fallthru
          _
        // Predicated region
        $region85: #{tpu_custom_call.1} parent=75 // pred_check
          %p466 = pneg %p221
        $region86: #{tpu_custom_call.1} parent=75 // pred_check_branch
          %468 = sbr.rel (%p466) target = $region88
        $region87: #{tpu_custom_call.1} parent=75 // pred_region
          %469 = dma.done [#allocation5], 128
        $region88: #{tpu_custom_call.1} parent=75 // pred_fallthru
          _
        %s470 = smul.u32 4, %s27
        %p471 = scmp.lt.s32.totalorder %s470, 11
        %s472 = scalar_select %p471, %s470, 11
        %s473 = smul.addr %s472, 8
        %s474 = scalar_lea.vmem %s0, %s473
        %p475 = pneg %p48
        %p476 = pneg %p45
        %s477 = smul.u32 4, %s27
        %p478 = scmp.lt.s32.totalorder %s477, 11
        %s479 = scalar_select %p478, %s477, 11
        %s480 = smul.addr %s479, 8
        %s481 = scalar_lea.vmem %s1, %s480
        %p482 = pneg %p74
        %p483 = pneg %p71
        %p484 = pneg %p95
        %p485 = pneg %p92
        %p486 = pneg %p116
        %p487 = pneg %p113
        %p488 = pneg %p137
        %p489 = pneg %p134
        %p490 = pneg %p158
        %p491 = pneg %p155
        %p492 = pneg %p179
        %p493 = pneg %p176
        %p494 = pneg %p200
        %p495 = pneg %p197
        %p496 = pneg %p221
        %p497 = pneg %p218
        %p498 = pneg %p242
        %p499 = pneg %p239
        %p500 = pneg %p263
        %p501 = pneg %p260
        %p502 = pneg %p284
        %p503 = pneg %p281
        %p504 = pneg %p305
        %p505 = pneg %p302
        %p506 = pneg %p326
        %p507 = pneg %p323
        %p508 = pneg %p352
        %p509 = pneg %p349
        %s510 = smul.u32 4, %s27
        %p511 = scmp.lt.s32.totalorder %s510, 11
        %s512 = scalar_select %p511, %s510, 11
        %s513 = smul.addr %s512, 8
        %s514 = scalar_lea.vmem %s14, %s513
        %s515 = smul.u32 4, %s27
        %p516 = scmp.lt.s32.totalorder %s515, 11
        %s517 = scalar_select %p516, %s515, 11
        %s518 = smul.addr %s517, 8
        %s519 = scalar_lea.vmem %s0, %s518
        %s520 = smul.u32 4, %s27
        %s521 = smul.u32 4, %s27
        %p522 = scmp.lt.s32.totalorder %s521, 11
        %s523 = scalar_select %p522, %s521, 11
        %s524 = smul.addr %s523, 8
        %s525 = scalar_lea.vmem %s1, %s524
        %s526 = smul.u32 4, %s27
        %s527 = smul.u32 4, %s27
        %p528 = scmp.lt.s32.totalorder %s527, 11
        %s529 = scalar_select %p528, %s527, 11
        %s530 = smul.addr %s529, 8
        %s531 = scalar_lea.vmem %s14, %s530
        %s532 = smul.u32 4, %s27
        %v534 = vld [vmem:[%s519] sm:$0xff]
        %v535 = vld [vmem:[%s519 + $0x8] sm:$0xff]
        %v536 = vld [vmem:[%s519 + $0x10] sm:$0xff]
        %v537 = vld [vmem:[%s519 + $0x18] sm:$0xff]
        %v538 = vpack.c.bf16 %v535, %v534
        %v539 = vpack.c.bf16 %v537, %v536
        %v540 = vld [vmem:[#allocation2] sm:$0xff]
        %v541 = vld [vmem:[#allocation2 + $0x8] sm:$0xff]
        %v542 = vld [vmem:[%s3] sm:$0x3]
        %v544 = vlaneseq
        %v545 = vshrl.u32 %v544, 7
        %v546 = vsub.s32 0, %v545
        %v547 = vrot.slane %v542, %v546
        %v548 = vlaneseq
        %v549 = vshrl.u32 %v548, 7
        %v550 = vsub.s32 1, %v549
        %v551 = vrot.slane %v542, %v550
        %v556 = vunpack.c.l.b16 %v540
        %v557 = vunpack.c.h.b16 %v540
        %v558 = vunpack.c.l.b16 %v541
        %v559 = vunpack.c.h.b16 %v541
        %v560 = vpack.c.b16 %v558, %v556
        %v561 = vpack.c.b16 %v559, %v557
        %vm564 = vcmask 130048
        %v566 = vsel %vm564, %v538, 0
        %v569 = vsel %vm564, %v539, 0
        %571 = vmatprep.subr.bf16.mxu0 %v561
        %572 = vmatpush1.bf16.msra.mxu0 %v560
        %573 = vmatprep.subr.bf16.mxu0 0
        %574 = vmatpush1.bf16.msra.mxu0 0
        %575 = vmatprep.subr.bf16.mxu0 0
        %576 = vmatpush1.bf16.msra.mxu0 0
        %577 = vmatprep.subr.bf16.mxu0 0
        %578 = vmatpush1.bf16.msra.mxu0 0
        %579 = vmatprep.subr.bf16.mxu0 0
        %580 = vmatpush1.bf16.msra.mxu0 0
        %581 = vmatprep.subr.bf16.mxu0 0
        %582 = vmatpush1.bf16.msra.mxu0 0
        %583 = vmatprep.subr.bf16.mxu0 0
        %584 = vmatpush1.bf16.msra.mxu0 0
        %585 = vmatprep.subr.bf16.mxu0 0
        %586 = vmatpush1.bf16.msra.mxu0 0
        %587 = vmatprep.subr.bf16.mxu0 0
        %588 = vmatpush1.bf16.msra.mxu0 0
        %589 = vmatprep.subr.bf16.mxu0 0
        %590 = vmatpush1.bf16.msra.mxu0 0
        %591 = vmatprep.subr.bf16.mxu0 0
        %592 = vmatpush1.bf16.msra.mxu0 0
        %593 = vmatprep.subr.bf16.mxu0 0
        %594 = vmatpush1.bf16.msra.mxu0 0
        %595 = vmatprep.subr.bf16.mxu0 0
        %596 = vmatpush1.bf16.msra.mxu0 0
        %597 = vmatprep.subr.bf16.mxu0 0
        %598 = vmatpush1.bf16.msra.mxu0 0
        %599 = vmatprep.subr.bf16.mxu0 0
        %600 = vmatpush1.bf16.msra.mxu0 0
        %601 = vmatprep.subr.bf16.mxu0 0
        %602 = vmatpush1.bf16.msra.mxu0 0
        %603 = vmatprep.mubr.bf16.mxu0 0
        %604 = vmatmul.mubr.bf16.gmra.mrb[0].mxu0 %v566
        %v605 = vpop.f32.mrb[0].mxu0
        %v606 = vadd.f32 %v547, %v605
        %v607 = vpop.f32.mrb[0].mxu0
        %v608 = vadd.f32 %v551, %v607
        %v609 = vpop.f32.mrb[0].mxu0
        %v610 = vadd.f32 %v547, %v609
        %v611 = vpop.f32.mrb[0].mxu0
        %v612 = vadd.f32 %v551, %v611
        %613 = vmatprep.mubr.bf16.mxu0 0
        %614 = vmatmul.mubr.bf16.gmra.mrb[0].mxu0 %v569
        %v615 = vpop.f32.mrb[0].mxu0
        %v616 = vadd.f32 %v547, %v615
        %v617 = vpop.f32.mrb[0].mxu0
        %v618 = vadd.f32 %v551, %v617
        %v619 = vpop.f32.mrb[0].mxu0
        %v620 = vadd.f32 %v547, %v619
        %v621 = vpop.f32.mrb[0].mxu0
        %v622 = vadd.f32 %v551, %v621
        %623 = vdwg.mxu0
        %v624 = vmax.f32 %v606, 0.0
        %v625 = vmax.f32 %v608, 0.0
        %v626 = vmax.f32 %v610, 0.0
        %v627 = vmax.f32 %v612, 0.0
        %v628 = vmax.f32 %v616, 0.0
        %v629 = vmax.f32 %v618, 0.0
        %v630 = vmax.f32 %v620, 0.0
        %v631 = vmax.f32 %v622, 0.0
        %v632 = vpack.c.bf16 %v626, %v624
        %v633 = vpack.c.bf16 %v627, %v625
        %v634 = vpack.c.bf16 %v630, %v628
        %v635 = vpack.c.bf16 %v631, %v629
        %v636 = vld [vmem:[%s4] sm:$0xff]
        %v637 = vld [vmem:[%s4 + $0x8] sm:$0xff]
        %v638 = vld [vmem:[%s4 + $0x10] sm:$0xff]
        %v639 = vld [vmem:[%s4 + $0x18] sm:$0xff]
        %v640 = vld [vmem:[%s4 + $0x20] sm:$0xff]
        %v641 = vld [vmem:[%s4 + $0x28] sm:$0xff]
        %v642 = vld [vmem:[%s4 + $0x30] sm:$0xff]
        %v643 = vld [vmem:[%s4 + $0x38] sm:$0xff]
        %v644 = vld [vmem:[%s4 + $0x40] sm:$0xff]
        %v645 = vld [vmem:[%s4 + $0x48] sm:$0xff]
        %v646 = vld [vmem:[%s4 + $0x50] sm:$0xff]
        %v647 = vld [vmem:[%s4 + $0x58] sm:$0xff]
        %v648 = vld [vmem:[%s4 + $0x60] sm:$0xff]
        %v649 = vld [vmem:[%s4 + $0x68] sm:$0xff]
        %v650 = vld [vmem:[%s4 + $0x70] sm:$0xff]
        %v651 = vld [vmem:[%s4 + $0x78] sm:$0xff]
        %v652 = vld [vmem:[%s4 + $0x80] sm:$0xff]
        %v653 = vld [vmem:[%s4 + $0x88] sm:$0xff]
        %v654 = vld [vmem:[%s4 + $0x90] sm:$0xff]
        %v655 = vld [vmem:[%s4 + $0x98] sm:$0xff]
        %v656 = vld [vmem:[%s4 + $0xa0] sm:$0xff]
        %v657 = vld [vmem:[%s4 + $0xa8] sm:$0xff]
        %v658 = vld [vmem:[%s4 + $0xb0] sm:$0xff]
        %v659 = vld [vmem:[%s4 + $0xb8] sm:$0xff]
        %v660 = vld [vmem:[%s4 + $0xc0] sm:$0xff]
        %v661 = vld [vmem:[%s4 + $0xc8] sm:$0xff]
        %v662 = vld [vmem:[%s4 + $0xd0] sm:$0xff]
        %v663 = vld [vmem:[%s4 + $0xd8] sm:$0xff]
        %v664 = vld [vmem:[%s4 + $0xe0] sm:$0xff]
        %v665 = vld [vmem:[%s4 + $0xe8] sm:$0xff]
        %v666 = vld [vmem:[%s4 + $0xf0] sm:$0xff]
        %v667 = vld [vmem:[%s4 + $0xf8] sm:$0xff]
        %v668 = vld [vmem:[%s5] sm:$0x3]
        %v670 = vlaneseq
        %v671 = vshrl.u32 %v670, 7
        %v672 = vsub.s32 0, %v671
        %v673 = vrot.slane %v668, %v672
        %v674 = vlaneseq
        %v675 = vshrl.u32 %v674, 7
        %v676 = vsub.s32 1, %v675
        %v677 = vrot.slane %v668, %v676
        %v712 = vunpack.c.l.b16 %v636
        %v713 = vunpack.c.h.b16 %v636
        %v714 = vunpack.c.l.b16 %v637
        %v715 = vunpack.c.h.b16 %v637
        %v716 = vunpack.c.l.b16 %v638
        %v717 = vunpack.c.h.b16 %v638
        %v718 = vunpack.c.l.b16 %v639
        %v719 = vunpack.c.h.b16 %v639
        %v720 = vunpack.c.l.b16 %v640
        %v721 = vunpack.c.h.b16 %v640
        %v722 = vunpack.c.l.b16 %v641
        %v723 = vunpack.c.h.b16 %v641
        %v724 = vunpack.c.l.b16 %v642
        %v725 = vunpack.c.h.b16 %v642
        %v726 = vunpack.c.l.b16 %v643
        %v727 = vunpack.c.h.b16 %v643
        %v728 = vunpack.c.l.b16 %v644
        %v729 = vunpack.c.h.b16 %v644
        %v730 = vunpack.c.l.b16 %v645
        %v731 = vunpack.c.h.b16 %v645
        %v732 = vunpack.c.l.b16 %v646
        %v733 = vunpack.c.h.b16 %v646
        %v734 = vunpack.c.l.b16 %v647
        %v735 = vunpack.c.h.b16 %v647
        %v736 = vunpack.c.l.b16 %v648
        %v737 = vunpack.c.h.b16 %v648
        %v738 = vunpack.c.l.b16 %v649
        %v739 = vunpack.c.h.b16 %v649
        %v740 = vunpack.c.l.b16 %v650
        %v741 = vunpack.c.h.b16 %v650
        %v742 = vunpack.c.l.b16 %v651
        %v743 = vunpack.c.h.b16 %v651
        %v744 = vunpack.c.l.b16 %v652
        %v745 = vunpack.c.h.b16 %v652
        %v746 = vunpack.c.l.b16 %v653
        %v747 = vunpack.c.h.b16 %v653
        %v748 = vunpack.c.l.b16 %v654
        %v749 = vunpack.c.h.b16 %v654
        %v750 = vunpack.c.l.b16 %v655
        %v751 = vunpack.c.h.b16 %v655
        %v752 = vunpack.c.l.b16 %v656
        %v753 = vunpack.c.h.b16 %v656
        %v754 = vunpack.c.l.b16 %v657
        %v755 = vunpack.c.h.b16 %v657
        %v756 = vunpack.c.l.b16 %v658
        %v757 = vunpack.c.h.b16 %v658
        %v758 = vunpack.c.l.b16 %v659
        %v759 = vunpack.c.h.b16 %v659
        %v760 = vunpack.c.l.b16 %v660
        %v761 = vunpack.c.h.b16 %v660
        %v762 = vunpack.c.l.b16 %v661
        %v763 = vunpack.c.h.b16 %v661
        %v764 = vunpack.c.l.b16 %v662
        %v765 = vunpack.c.h.b16 %v662
        %v766 = vunpack.c.l.b16 %v663
        %v767 = vunpack.c.h.b16 %v663
        %v768 = vunpack.c.l.b16 %v664
        %v769 = vunpack.c.h.b16 %v664
        %v770 = vunpack.c.l.b16 %v665
        %v771 = vunpack.c.h.b16 %v665
        %v772 = vunpack.c.l.b16 %v666
        %v773 = vunpack.c.h.b16 %v666
        %v774 = vunpack.c.l.b16 %v667
        %v775 = vunpack.c.h.b16 %v667
        %v776 = vpack.c.b16 %v714, %v712
        %v777 = vpack.c.b16 %v715, %v713
        %v778 = vpack.c.b16 %v718, %v716
        %v779 = vpack.c.b16 %v719, %v717
        %v780 = vpack.c.b16 %v722, %v720
        %v781 = vpack.c.b16 %v723, %v721
        %v782 = vpack.c.b16 %v726, %v724
        %v783 = vpack.c.b16 %v727, %v725
        %v784 = vpack.c.b16 %v730, %v728
        %v785 = vpack.c.b16 %v731, %v729
        %v786 = vpack.c.b16 %v734, %v732
        %v787 = vpack.c.b16 %v735, %v733
        %v788 = vpack.c.b16 %v738, %v736
        %v789 = vpack.c.b16 %v739, %v737
        %v790 = vpack.c.b16 %v742, %v740
        %v791 = vpack.c.b16 %v743, %v741
        %v792 = vpack.c.b16 %v746, %v744
        %v793 = vpack.c.b16 %v747, %v745
        %v794 = vpack.c.b16 %v750, %v748
        %v795 = vpack.c.b16 %v751, %v749
        %v796 = vpack.c.b16 %v754, %v752
        %v797 = vpack.c.b16 %v755, %v753
        %v798 = vpack.c.b16 %v758, %v756
        %v799 = vpack.c.b16 %v759, %v757
        %v800 = vpack.c.b16 %v762, %v760
        %v801 = vpack.c.b16 %v763, %v761
        %v802 = vpack.c.b16 %v766, %v764
        %v803 = vpack.c.b16 %v767, %v765
        %v804 = vpack.c.b16 %v770, %v768
        %v805 = vpack.c.b16 %v771, %v769
        %v806 = vpack.c.b16 %v774, %v772
        %v807 = vpack.c.b16 %v775, %v773
        %840 = vmatprep.subr.bf16.mxu0 %v777
        %841 = vmatpush1.bf16.msra.mxu0 %v776
        %842 = vmatprep.subr.bf16.mxu0 %v779
        %843 = vmatpush1.bf16.msra.mxu0 %v778
        %844 = vmatprep.subr.bf16.mxu0 %v781
        %845 = vmatpush1.bf16.msra.mxu0 %v780
        %846 = vmatprep.subr.bf16.mxu0 %v783
        %847 = vmatpush1.bf16.msra.mxu0 %v782
        %848 = vmatprep.subr.bf16.mxu0 %v785
        %849 = vmatpush1.bf16.msra.mxu0 %v784
        %850 = vmatprep.subr.bf16.mxu0 %v787
        %851 = vmatpush1.bf16.msra.mxu0 %v786
        %852 = vmatprep.subr.bf16.mxu0 %v789
        %853 = vmatpush1.bf16.msra.mxu0 %v788
        %854 = vmatprep.subr.bf16.mxu0 %v791
        %855 = vmatpush1.bf16.msra.mxu0 %v790
        %856 = vmatprep.subr.bf16.mxu0 %v793
        %857 = vmatpush1.bf16.msra.mxu0 %v792
        %858 = vmatprep.subr.bf16.mxu0 %v795
        %859 = vmatpush1.bf16.msra.mxu0 %v794
        %860 = vmatprep.subr.bf16.mxu0 %v797
        %861 = vmatpush1.bf16.msra.mxu0 %v796
        %862 = vmatprep.subr.bf16.mxu0 %v799
        %863 = vmatpush1.bf16.msra.mxu0 %v798
        %864 = vmatprep.subr.bf16.mxu0 %v801
        %865 = vmatpush1.bf16.msra.mxu0 %v800
        %866 = vmatprep.subr.bf16.mxu0 %v803
        %867 = vmatpush1.bf16.msra.mxu0 %v802
        %868 = vmatprep.subr.bf16.mxu0 %v805
        %869 = vmatpush1.bf16.msra.mxu0 %v804
        %870 = vmatprep.subr.bf16.mxu0 %v807
        %871 = vmatpush1.bf16.msra.mxu0 %v806
        %872 = vmatprep.mubr.bf16.mxu0 %v633
        %873 = vmatmul.mubr.bf16.gmra.mrb[0].mxu0 %v632
        %v874 = vpop.f32.mrb[0].mxu0
        %v875 = vadd.f32 %v673, %v874
        %v876 = vpop.f32.mrb[0].mxu0
        %v877 = vadd.f32 %v677, %v876
        %v878 = vpop.f32.mrb[0].mxu0
        %v879 = vadd.f32 %v673, %v878
        %v880 = vpop.f32.mrb[0].mxu0
        %v881 = vadd.f32 %v677, %v880
        %882 = vmatprep.mubr.bf16.mxu0 %v635
        %883 = vmatmul.mubr.bf16.gmra.mrb[0].mxu0 %v634
        %v884 = vpop.f32.mrb[0].mxu0
        %v885 = vadd.f32 %v673, %v884
        %v886 = vpop.f32.mrb[0].mxu0
        %v887 = vadd.f32 %v677, %v886
        %v888 = vpop.f32.mrb[0].mxu0
        %v889 = vadd.f32 %v673, %v888
        %v890 = vpop.f32.mrb[0].mxu0
        %v891 = vadd.f32 %v677, %v890
        %892 = vdwg.mxu0
        %v893 = vmax.f32 %v875, 0.0
        %v894 = vmax.f32 %v877, 0.0
        %v895 = vmax.f32 %v879, 0.0
        %v896 = vmax.f32 %v881, 0.0
        %v897 = vmax.f32 %v885, 0.0
        %v898 = vmax.f32 %v887, 0.0
        %v899 = vmax.f32 %v889, 0.0
        %v900 = vmax.f32 %v891, 0.0
        %v901 = vpack.c.bf16 %v895, %v893
        %v902 = vpack.c.bf16 %v896, %v894
        %v903 = vpack.c.bf16 %v899, %v897
        %v904 = vpack.c.bf16 %v900, %v898
        %v905 = vld [vmem:[%s6] sm:$0xf]
        %v906 = vld [vmem:[%s6 + $0x4] sm:$0xf]
        %v907 = vld [vmem:[%s6 + $0x8] sm:$0xf]
        %v908 = vld [vmem:[%s6 + $0xc] sm:$0xf]
        %v909 = vld [vmem:[%s6 + $0x10] sm:$0xf]
        %v910 = vld [vmem:[%s6 + $0x14] sm:$0xf]
        %v911 = vld [vmem:[%s6 + $0x18] sm:$0xf]
        %v912 = vld [vmem:[%s6 + $0x1c] sm:$0xf]
        %v913 = vld [vmem:[%s6 + $0x20] sm:$0xf]
        %v914 = vld [vmem:[%s6 + $0x24] sm:$0xf]
        %v915 = vld [vmem:[%s6 + $0x28] sm:$0xf]
        %v916 = vld [vmem:[%s6 + $0x2c] sm:$0xf]
        %v917 = vld [vmem:[%s6 + $0x30] sm:$0xf]
        %v918 = vld [vmem:[%s6 + $0x34] sm:$0xf]
        %v919 = vld [vmem:[%s6 + $0x38] sm:$0xf]
        %v920 = vld [vmem:[%s6 + $0x3c] sm:$0xf]
        %v921 = vld [vmem:[%s6 + $0x40] sm:$0xf]
        %v922 = vld [vmem:[%s6 + $0x44] sm:$0xf]
        %v923 = vld [vmem:[%s6 + $0x48] sm:$0xf]
        %v924 = vld [vmem:[%s6 + $0x4c] sm:$0xf]
        %v925 = vld [vmem:[%s6 + $0x50] sm:$0xf]
        %v926 = vld [vmem:[%s6 + $0x54] sm:$0xf]
        %v927 = vld [vmem:[%s6 + $0x58] sm:$0xf]
        %v928 = vld [vmem:[%s6 + $0x5c] sm:$0xf]
        %v929 = vld [vmem:[%s6 + $0x60] sm:$0xf]
        %v930 = vld [vmem:[%s6 + $0x64] sm:$0xf]
        %v931 = vld [vmem:[%s6 + $0x68] sm:$0xf]
        %v932 = vld [vmem:[%s6 + $0x6c] sm:$0xf]
        %v933 = vld [vmem:[%s6 + $0x70] sm:$0xf]
        %v934 = vld [vmem:[%s6 + $0x74] sm:$0xf]
        %v935 = vld [vmem:[%s6 + $0x78] sm:$0xf]
        %v936 = vld [vmem:[%s6 + $0x7c] sm:$0xf]
        %v937 = vld [vmem:[#allocation4] sm:$0x1]
        %v939 = vlaneseq
        %v940 = vshrl.u32 %v939, 7
        %v941 = vsub.s32 0, %v940
        %v942 = vrot.slane %v937, %v941
        %v976 = vunpack.c.l.b16 %v905
        %v977 = vunpack.c.l.b16 %v906
        %v978 = vunpack.c.l.b16 %v907
        %v979 = vunpack.c.l.b16 %v908
        %v980 = vunpack.c.l.b16 %v909
        %v981 = vunpack.c.l.b16 %v910
        %v982 = vunpack.c.l.b16 %v911
        %v983 = vunpack.c.l.b16 %v912
        %v984 = vunpack.c.l.b16 %v913
        %v985 = vunpack.c.l.b16 %v914
        %v986 = vunpack.c.l.b16 %v915
        %v987 = vunpack.c.l.b16 %v916
        %v988 = vunpack.c.l.b16 %v917
        %v989 = vunpack.c.l.b16 %v918
        %v990 = vunpack.c.l.b16 %v919
        %v991 = vunpack.c.l.b16 %v920
        %v992 = vunpack.c.l.b16 %v921
        %v993 = vunpack.c.l.b16 %v922
        %v994 = vunpack.c.l.b16 %v923
        %v995 = vunpack.c.l.b16 %v924
        %v996 = vunpack.c.l.b16 %v925
        %v997 = vunpack.c.l.b16 %v926
        %v998 = vunpack.c.l.b16 %v927
        %v999 = vunpack.c.l.b16 %v928
        %v1000 = vunpack.c.l.b16 %v929
        %v1001 = vunpack.c.l.b16 %v930
        %v1002 = vunpack.c.l.b16 %v931
        %v1003 = vunpack.c.l.b16 %v932
        %v1004 = vunpack.c.l.b16 %v933
        %v1005 = vunpack.c.l.b16 %v934
        %v1006 = vunpack.c.l.b16 %v935
        %v1007 = vunpack.c.l.b16 %v936
        %v1008 = vpack.c.b16 %v977, %v976
        %v1009 = vpack.c.b16 %v979, %v978
        %v1010 = vpack.c.b16 %v981, %v980
        %v1011 = vpack.c.b16 %v983, %v982
        %v1012 = vpack.c.b16 %v985, %v984
        %v1013 = vpack.c.b16 %v987, %v986
        %v1014 = vpack.c.b16 %v989, %v988
        %v1015 = vpack.c.b16 %v991, %v990
        %v1016 = vpack.c.b16 %v993, %v992
        %v1017 = vpack.c.b16 %v995, %v994
        %v1018 = vpack.c.b16 %v997, %v996
        %v1019 = vpack.c.b16 %v999, %v998
        %v1020 = vpack.c.b16 %v1001, %v1000
        %v1021 = vpack.c.b16 %v1003, %v1002
        %v1022 = vpack.c.b16 %v1005, %v1004
        %v1023 = vpack.c.b16 %v1007, %v1006
        %1040 = vmatprep.subr.bf16.mxu0 0
        %1041 = vmatpush1.bf16.msra.mxu0 %v1008
        %1042 = vmatprep.subr.bf16.mxu0 0
        %1043 = vmatpush1.bf16.msra.mxu0 %v1009
        %1044 = vmatprep.subr.bf16.mxu0 0
        %1045 = vmatpush1.bf16.msra.mxu0 %v1010
        %1046 = vmatprep.subr.bf16.mxu0 0
        %1047 = vmatpush1.bf16.msra.mxu0 %v1011
        %1048 = vmatprep.subr.bf16.mxu0 0
        %1049 = vmatpush1.bf16.msra.mxu0 %v1012
        %1050 = vmatprep.subr.bf16.mxu0 0
        %1051 = vmatpush1.bf16.msra.mxu0 %v1013
        %1052 = vmatprep.subr.bf16.mxu0 0
        %1053 = vmatpush1.bf16.msra.mxu0 %v1014
        %1054 = vmatprep.subr.bf16.mxu0 0
        %1055 = vmatpush1.bf16.msra.mxu0 %v1015
        %1056 = vmatprep.subr.bf16.mxu0 0
        %1057 = vmatpush1.bf16.msra.mxu0 %v1016
        %1058 = vmatprep.subr.bf16.mxu0 0
        %1059 = vmatpush1.bf16.msra.mxu0 %v1017
        %1060 = vmatprep.subr.bf16.mxu0 0
        %1061 = vmatpush1.bf16.msra.mxu0 %v1018
        %1062 = vmatprep.subr.bf16.mxu0 0
        %1063 = vmatpush1.bf16.msra.mxu0 %v1019
        %1064 = vmatprep.subr.bf16.mxu0 0
        %1065 = vmatpush1.bf16.msra.mxu0 %v1020
        %1066 = vmatprep.subr.bf16.mxu0 0
        %1067 = vmatpush1.bf16.msra.mxu0 %v1021
        %1068 = vmatprep.subr.bf16.mxu0 0
        %1069 = vmatpush1.bf16.msra.mxu0 %v1022
        %1070 = vmatprep.subr.bf16.mxu0 0
        %1071 = vmatpush1.bf16.msra.mxu0 %v1023
        %1072 = vmatprep.mubr.bf16.mxu0 %v902
        %1073 = vmatmul.mubr.bf16.gmra.mrb[0].mxu0 %v901
        %v1074 = vpop.f32.mrb[0].mxu0
        %v1075 = vadd.f32 %v942, %v1074
        %v1076 = vpop.f32.mrb[0].mxu0
        %v1077 = vpop.f32.mrb[0].mxu0
        %v1078 = vadd.f32 %v942, %v1077
        %v1079 = vpop.f32.mrb[0].mxu0
        %1080 = vmatprep.mubr.bf16.mxu0 %v904
        %1081 = vmatmul.mubr.bf16.gmra.mrb[0].mxu0 %v903
        %v1082 = vpop.f32.mrb[0].mxu0
        %v1083 = vadd.f32 %v942, %v1082
        %v1084 = vpop.f32.mrb[0].mxu0
        %v1085 = vpop.f32.mrb[0].mxu0
        %v1086 = vadd.f32 %v942, %v1085
        %v1087 = vpop.f32.mrb[0].mxu0
        %1088 = vdwg.mxu0
        %v1089 = vld [vmem:[%s525] sm:$0xff]
        %v1090 = vld [vmem:[%s525 + $0x8] sm:$0xff]
        %v1091 = vld [vmem:[%s525 + $0x10] sm:$0xff]
        %v1092 = vld [vmem:[%s525 + $0x18] sm:$0xff]
        %v1093 = vmul.f32 %v1075, 1.442695
        %v1094 = vpow.pop %v1093
        %v1095 = vmul.f32 %v1078, 1.442695
        %v1096 = vpow.pop %v1095
        %v1097 = vmul.f32 %v1083, 1.442695
        %v1098 = vpow.pop %v1097
        %v1099 = vmul.f32 %v1086, 1.442695
        %v1100 = vpow.pop %v1099
        %1105 = vrot.lane.b32.xlu0 %v1094, 120
        %v1106 = vpop.permute.xlu0 %1105
        %1107 = vrot.lane.b32.xlu0 %v1096, 120
        %v1108 = vpop.permute.xlu0 %1107
        %1109 = vrot.lane.b32.xlu0 %v1098, 120
        %v1110 = vpop.permute.xlu0 %1109
        %1111 = vrot.lane.b32.xlu0 %v1100, 120
        %v1112 = vpop.permute.xlu0 %1111
        %v1117 = vmul.f32 %v1089, %v1106
        %v1118 = vmul.f32 %v1090, %v1108
        %v1119 = vmul.f32 %v1091, %v1110
        %v1120 = vmul.f32 %v1092, %v1112
        %v1121 = vadd.f32 %v1075, %v1117
        %v1122 = vadd.f32 %v1078, %v1118
        %v1123 = vadd.f32 %v1083, %v1119
        %v1124 = vadd.f32 %v1086, %v1120
        %v1125 = vpack.c.bf16 %v1122, %v1121
        %v1126 = vpack.c.bf16 %v1124, %v1123
        %v1127 = vld [vmem:[#allocation6] sm:$0xff]
        %v1128 = vld [vmem:[%s9] sm:$0x3]
        %v1130 = vlaneseq
        %v1131 = vshrl.u32 %v1130, 7
        %v1132 = vsub.s32 0, %v1131
        %v1133 = vrot.slane %v1128, %v1132
        %v1134 = vlaneseq
        %v1135 = vshrl.u32 %v1134, 7
        %v1136 = vsub.s32 1, %v1135
        %v1137 = vrot.slane %v1128, %v1136
        %v1141 = vunpack.c.l.b16 %v1127
        %v1142 = vunpack.c.h.b16 %v1127
        %v1143 = vpack.c.b16 %v1141, %v1141
        %v1144 = vpack.c.b16 %v1142, %v1142
        %vm1145 = vcmask 64512
        %v1147 = vsel %vm1145, %v1125, 0
        %v1150 = vsel %vm1145, %v1126, 0
        %vm1152 = vcmask 1043456
        %v1154 = vsel %vm1152, %v1143, 0
        %v1157 = vsel %vm1152, %v1144, 0
        %1159 = vmatprep.subr.bf16.mxu0 %v1157
        %1160 = vmatpush1.bf16.msra.mxu0 %v1154
        %1161 = vmatprep.subr.bf16.mxu0 0
        %1162 = vmatpush1.bf16.msra.mxu0 0
        %1163 = vmatprep.subr.bf16.mxu0 0
        %1164 = vmatpush1.bf16.msra.mxu0 0
        %1165 = vmatprep.subr.bf16.mxu0 0
        %1166 = vmatpush1.bf16.msra.mxu0 0
        %1167 = vmatprep.subr.bf16.mxu0 0
        %1168 = vmatpush1.bf16.msra.mxu0 0
        %1169 = vmatprep.subr.bf16.mxu0 0
        %1170 = vmatpush1.bf16.msra.mxu0 0
        %1171 = vmatprep.subr.bf16.mxu0 0
        %1172 = vmatpush1.bf16.msra.mxu0 0
        %1173 = vmatprep.subr.bf16.mxu0 0
        %1174 = vmatpush1.bf16.msra.mxu0 0
        %1175 = vmatprep.subr.bf16.mxu0 0
        %1176 = vmatpush1.bf16.msra.mxu0 0
        %1177 = vmatprep.subr.bf16.mxu0 0
        %1178 = vmatpush1.bf16.msra.mxu0 0
        %1179 = vmatprep.subr.bf16.mxu0 0
        %1180 = vmatpush1.bf16.msra.mxu0 0
        %1181 = vmatprep.subr.bf16.mxu0 0
        %1182 = vmatpush1.bf16.msra.mxu0 0
        %1183 = vmatprep.subr.bf16.mxu0 0
        %1184 = vmatpush1.bf16.msra.mxu0 0
        %1185 = vmatprep.subr.bf16.mxu0 0
        %1186 = vmatpush1.bf16.msra.mxu0 0
        %1187 = vmatprep.subr.bf16.mxu0 0
        %1188 = vmatpush1.bf16.msra.mxu0 0
        %1189 = vmatprep.subr.bf16.mxu0 0
        %1190 = vmatpush1.bf16.msra.mxu0 0
        %1191 = vmatprep.mubr.bf16.mxu0 0
        %1192 = vmatmul.mubr.bf16.gmra.mrb[0].mxu0 %v1147
        %v1193 = vpop.f32.mrb[0].mxu0
        %v1194 = vadd.f32 %v1133, %v1193
        %v1195 = vpop.f32.mrb[0].mxu0
        %v1196 = vadd.f32 %v1137, %v1195
        %v1197 = vpop.f32.mrb[0].mxu0
        %v1198 = vadd.f32 %v1133, %v1197
        %v1199 = vpop.f32.mrb[0].mxu0
        %v1200 = vadd.f32 %v1137, %v1199
        %1201 = vmatprep.mubr.bf16.mxu0 0
        %1202 = vmatmul.mubr.bf16.gmra.mrb[0].mxu0 %v1150
        %v1203 = vpop.f32.mrb[0].mxu0
        %v1204 = vadd.f32 %v1133, %v1203
        %v1205 = vpop.f32.mrb[0].mxu0
        %v1206 = vadd.f32 %v1137, %v1205
        %v1207 = vpop.f32.mrb[0].mxu0
        %v1208 = vadd.f32 %v1133, %v1207
        %v1209 = vpop.f32.mrb[0].mxu0
        %v1210 = vadd.f32 %v1137, %v1209
        %1211 = vdwg.mxu0
        %v1212 = vmax.f32 %v1194, 0.0
        %v1213 = vmax.f32 %v1196, 0.0
        %v1214 = vmax.f32 %v1198, 0.0
        %v1215 = vmax.f32 %v1200, 0.0
        %v1216 = vmax.f32 %v1204, 0.0
        %v1217 = vmax.f32 %v1206, 0.0
        %v1218 = vmax.f32 %v1208, 0.0
        %v1219 = vmax.f32 %v1210, 0.0
        %v1220 = vpack.c.bf16 %v1214, %v1212
        %v1221 = vpack.c.bf16 %v1215, %v1213
        %v1222 = vpack.c.bf16 %v1218, %v1216
        %v1223 = vpack.c.bf16 %v1219, %v1217
        %v1224 = vld [vmem:[%s10] sm:$0xff]
        %v1225 = vld [vmem:[%s10 + $0x8] sm:$0xff]
        %v1226 = vld [vmem:[%s10 + $0x10] sm:$0xff]
        %v1227 = vld [vmem:[%s10 + $0x18] sm:$0xff]
        %v1228 = vld [vmem:[%s10 + $0x20] sm:$0xff]
        %v1229 = vld [vmem:[%s10 + $0x28] sm:$0xff]
        %v1230 = vld [vmem:[%s10 + $0x30] sm:$0xff]
        %v1231 = vld [vmem:[%s10 + $0x38] sm:$0xff]
        %v1232 = vld [vmem:[%s10 + $0x40] sm:$0xff]
        %v1233 = vld [vmem:[%s10 + $0x48] sm:$0xff]
        %v1234 = vld [vmem:[%s10 + $0x50] sm:$0xff]
        %v1235 = vld [vmem:[%s10 + $0x58] sm:$0xff]
        %v1236 = vld [vmem:[%s10 + $0x60] sm:$0xff]
        %v1237 = vld [vmem:[%s10 + $0x68] sm:$0xff]
        %v1238 = vld [vmem:[%s10 + $0x70] sm:$0xff]
        %v1239 = vld [vmem:[%s10 + $0x78] sm:$0xff]
        %v1240 = vld [vmem:[%s10 + $0x80] sm:$0xff]
        %v1241 = vld [vmem:[%s10 + $0x88] sm:$0xff]
        %v1242 = vld [vmem:[%s10 + $0x90] sm:$0xff]
        %v1243 = vld [vmem:[%s10 + $0x98] sm:$0xff]
        %v1244 = vld [vmem:[%s10 + $0xa0] sm:$0xff]
        %v1245 = vld [vmem:[%s10 + $0xa8] sm:$0xff]
        %v1246 = vld [vmem:[%s10 + $0xb0] sm:$0xff]
        %v1247 = vld [vmem:[%s10 + $0xb8] sm:$0xff]
        %v1248 = vld [vmem:[%s10 + $0xc0] sm:$0xff]
        %v1249 = vld [vmem:[%s10 + $0xc8] sm:$0xff]
        %v1250 = vld [vmem:[%s10 + $0xd0] sm:$0xff]
        %v1251 = vld [vmem:[%s10 + $0xd8] sm:$0xff]
        %v1252 = vld [vmem:[%s10 + $0xe0] sm:$0xff]
        %v1253 = vld [vmem:[%s10 + $0xe8] sm:$0xff]
        %v1254 = vld [vmem:[%s10 + $0xf0] sm:$0xff]
        %v1255 = vld [vmem:[%s10 + $0xf8] sm:$0xff]
        %v1256 = vld [vmem:[%s11] sm:$0x3]
        %v1258 = vlaneseq
        %v1259 = vshrl.u32 %v1258, 7
        %v1260 = vsub.s32 0, %v1259
        %v1261 = vrot.slane %v1256, %v1260
        %v1262 = vlaneseq
        %v1263 = vshrl.u32 %v1262, 7
        %v1264 = vsub.s32 1, %v1263
        %v1265 = vrot.slane %v1256, %v1264
        %v1300 = vunpack.c.l.b16 %v1224
        %v1301 = vunpack.c.h.b16 %v1224
        %v1302 = vunpack.c.l.b16 %v1225
        %v1303 = vunpack.c.h.b16 %v1225
        %v1304 = vunpack.c.l.b16 %v1226
        %v1305 = vunpack.c.h.b16 %v1226
        %v1306 = vunpack.c.l.b16 %v1227
        %v1307 = vunpack.c.h.b16 %v1227
        %v1308 = vunpack.c.l.b16 %v1228
        %v1309 = vunpack.c.h.b16 %v1228
        %v1310 = vunpack.c.l.b16 %v1229
        %v1311 = vunpack.c.h.b16 %v1229
        %v1312 = vunpack.c.l.b16 %v1230
        %v1313 = vunpack.c.h.b16 %v1230
        %v1314 = vunpack.c.l.b16 %v1231
        %v1315 = vunpack.c.h.b16 %v1231
        %v1316 = vunpack.c.l.b16 %v1232
        %v1317 = vunpack.c.h.b16 %v1232
        %v1318 = vunpack.c.l.b16 %v1233
        %v1319 = vunpack.c.h.b16 %v1233
        %v1320 = vunpack.c.l.b16 %v1234
        %v1321 = vunpack.c.h.b16 %v1234
        %v1322 = vunpack.c.l.b16 %v1235
        %v1323 = vunpack.c.h.b16 %v1235
        %v1324 = vunpack.c.l.b16 %v1236
        %v1325 = vunpack.c.h.b16 %v1236
        %v1326 = vunpack.c.l.b16 %v1237
        %v1327 = vunpack.c.h.b16 %v1237
        %v1328 = vunpack.c.l.b16 %v1238
        %v1329 = vunpack.c.h.b16 %v1238
        %v1330 = vunpack.c.l.b16 %v1239
        %v1331 = vunpack.c.h.b16 %v1239
        %v1332 = vunpack.c.l.b16 %v1240
        %v1333 = vunpack.c.h.b16 %v1240
        %v1334 = vunpack.c.l.b16 %v1241
        %v1335 = vunpack.c.h.b16 %v1241
        %v1336 = vunpack.c.l.b16 %v1242
        %v1337 = vunpack.c.h.b16 %v1242
        %v1338 = vunpack.c.l.b16 %v1243
        %v1339 = vunpack.c.h.b16 %v1243
        %v1340 = vunpack.c.l.b16 %v1244
        %v1341 = vunpack.c.h.b16 %v1244
        %v1342 = vunpack.c.l.b16 %v1245
        %v1343 = vunpack.c.h.b16 %v1245
        %v1344 = vunpack.c.l.b16 %v1246
        %v1345 = vunpack.c.h.b16 %v1246
        %v1346 = vunpack.c.l.b16 %v1247
        %v1347 = vunpack.c.h.b16 %v1247
        %v1348 = vunpack.c.l.b16 %v1248
        %v1349 = vunpack.c.h.b16 %v1248
        %v1350 = vunpack.c.l.b16 %v1249
        %v1351 = vunpack.c.h.b16 %v1249
        %v1352 = vunpack.c.l.b16 %v1250
        %v1353 = vunpack.c.h.b16 %v1250
        %v1354 = vunpack.c.l.b16 %v1251
        %v1355 = vunpack.c.h.b16 %v1251
        %v1356 = vunpack.c.l.b16 %v1252
        %v1357 = vunpack.c.h.b16 %v1252
        %v1358 = vunpack.c.l.b16 %v1253
        %v1359 = vunpack.c.h.b16 %v1253
        %v1360 = vunpack.c.l.b16 %v1254
        %v1361 = vunpack.c.h.b16 %v1254
        %v1362 = vunpack.c.l.b16 %v1255
        %v1363 = vunpack.c.h.b16 %v1255
        %v1364 = vpack.c.b16 %v1302, %v1300
        %v1365 = vpack.c.b16 %v1303, %v1301
        %v1366 = vpack.c.b16 %v1306, %v1304
        %v1367 = vpack.c.b16 %v1307, %v1305
        %v1368 = vpack.c.b16 %v1310, %v1308
        %v1369 = vpack.c.b16 %v1311, %v1309
        %v1370 = vpack.c.b16 %v1314, %v1312
        %v1371 = vpack.c.b16 %v1315, %v1313
        %v1372 = vpack.c.b16 %v1318, %v1316
        %v1373 = vpack.c.b16 %v1319, %v1317
        %v1374 = vpack.c.b16 %v1322, %v1320
        %v1375 = vpack.c.b16 %v1323, %v1321
        %v1376 = vpack.c.b16 %v1326, %v1324
        %v1377 = vpack.c.b16 %v1327, %v1325
        %v1378 = vpack.c.b16 %v1330, %v1328
        %v1379 = vpack.c.b16 %v1331, %v1329
        %v1380 = vpack.c.b16 %v1334, %v1332
        %v1381 = vpack.c.b16 %v1335, %v1333
        %v1382 = vpack.c.b16 %v1338, %v1336
        %v1383 = vpack.c.b16 %v1339, %v1337
        %v1384 = vpack.c.b16 %v1342, %v1340
        %v1385 = vpack.c.b16 %v1343, %v1341
        %v1386 = vpack.c.b16 %v1346, %v1344
        %v1387 = vpack.c.b16 %v1347, %v1345
        %v1388 = vpack.c.b16 %v1350, %v1348
        %v1389 = vpack.c.b16 %v1351, %v1349
        %v1390 = vpack.c.b16 %v1354, %v1352
        %v1391 = vpack.c.b16 %v1355, %v1353
        %v1392 = vpack.c.b16 %v1358, %v1356
        %v1393 = vpack.c.b16 %v1359, %v1357
        %v1394 = vpack.c.b16 %v1362, %v1360
        %v1395 = vpack.c.b16 %v1363, %v1361
        %1428 = vmatprep.subr.bf16.mxu0 %v1365
        %1429 = vmatpush1.bf16.msra.mxu0 %v1364
        %1430 = vmatprep.subr.bf16.mxu0 %v1367
        %1431 = vmatpush1.bf16.msra.mxu0 %v1366
        %1432 = vmatprep.subr.bf16.mxu0 %v1369
        %1433 = vmatpush1.bf16.msra.mxu0 %v1368
        %1434 = vmatprep.subr.bf16.mxu0 %v1371
        %1435 = vmatpush1.bf16.msra.mxu0 %v1370
        %1436 = vmatprep.subr.bf16.mxu0 %v1373
        %1437 = vmatpush1.bf16.msra.mxu0 %v1372
        %1438 = vmatprep.subr.bf16.mxu0 %v1375
        %1439 = vmatpush1.bf16.msra.mxu0 %v1374
        %1440 = vmatprep.subr.bf16.mxu0 %v1377
        %1441 = vmatpush1.bf16.msra.mxu0 %v1376
        %1442 = vmatprep.subr.bf16.mxu0 %v1379
        %1443 = vmatpush1.bf16.msra.mxu0 %v1378
        %1444 = vmatprep.subr.bf16.mxu0 %v1381
        %1445 = vmatpush1.bf16.msra.mxu0 %v1380
        %1446 = vmatprep.subr.bf16.mxu0 %v1383
        %1447 = vmatpush1.bf16.msra.mxu0 %v1382
        %1448 = vmatprep.subr.bf16.mxu0 %v1385
        %1449 = vmatpush1.bf16.msra.mxu0 %v1384
        %1450 = vmatprep.subr.bf16.mxu0 %v1387
        %1451 = vmatpush1.bf16.msra.mxu0 %v1386
        %1452 = vmatprep.subr.bf16.mxu0 %v1389
        %1453 = vmatpush1.bf16.msra.mxu0 %v1388
        %1454 = vmatprep.subr.bf16.mxu0 %v1391
        %1455 = vmatpush1.bf16.msra.mxu0 %v1390
        %1456 = vmatprep.subr.bf16.mxu0 %v1393
        %1457 = vmatpush1.bf16.msra.mxu0 %v1392
        %1458 = vmatprep.subr.bf16.mxu0 %v1395
        %1459 = vmatpush1.bf16.msra.mxu0 %v1394
        %1460 = vmatprep.mubr.bf16.mxu0 %v1221
        %1461 = vmatmul.mubr.bf16.gmra.mrb[0].mxu0 %v1220
        %v1462 = vpop.f32.mrb[0].mxu0
        %v1463 = vadd.f32 %v1261, %v1462
        %v1464 = vpop.f32.mrb[0].mxu0
        %v1465 = vadd.f32 %v1265, %v1464
        %v1466 = vpop.f32.mrb[0].mxu0
        %v1467 = vadd.f32 %v1261, %v1466
        %v1468 = vpop.f32.mrb[0].mxu0
        %v1469 = vadd.f32 %v1265, %v1468
        %1470 = vmatprep.mubr.bf16.mxu0 %v1223
        %1471 = vmatmul.mubr.bf16.gmra.mrb[0].mxu0 %v1222
        %v1472 = vpop.f32.mrb[0].mxu0
        %v1473 = vadd.f32 %v1261, %v1472
        %v1474 = vpop.f32.mrb[0].mxu0
        %v1475 = vadd.f32 %v1265, %v1474
        %v1476 = vpop.f32.mrb[0].mxu0
        %v1477 = vadd.f32 %v1261, %v1476
        %v1478 = vpop.f32.mrb[0].mxu0
        %v1479 = vadd.f32 %v1265, %v1478
        %1480 = vdwg.mxu0
        %v1481 = vmax.f32 %v1463, 0.0
        %v1482 = vmax.f32 %v1465, 0.0
        %v1483 = vmax.f32 %v1467, 0.0
        %v1484 = vmax.f32 %v1469, 0.0
        %v1485 = vmax.f32 %v1473, 0.0
        %v1486 = vmax.f32 %v1475, 0.0
        %v1487 = vmax.f32 %v1477, 0.0
        %v1488 = vmax.f32 %v1479, 0.0
        %v1489 = vpack.c.bf16 %v1483, %v1481
        %v1490 = vpack.c.bf16 %v1484, %v1482
        %v1491 = vpack.c.bf16 %v1487, %v1485
        %v1492 = vpack.c.bf16 %v1488, %v1486
        %v1493 = vld [vmem:[%s12] sm:$0xf]
        %v1494 = vld [vmem:[%s12 + $0x4] sm:$0xf]
        %v1495 = vld [vmem:[%s12 + $0x8] sm:$0xf]
        %v1496 = vld [vmem:[%s12 + $0xc] sm:$0xf]
        %v1497 = vld [vmem:[%s12 + $0x10] sm:$0xf]
        %v1498 = vld [vmem:[%s12 + $0x14] sm:$0xf]
        %v1499 = vld [vmem:[%s12 + $0x18] sm:$0xf]
        %v1500 = vld [vmem:[%s12 + $0x1c] sm:$0xf]
        %v1501 = vld [vmem:[%s12 + $0x20] sm:$0xf]
        %v1502 = vld [vmem:[%s12 + $0x24] sm:$0xf]
        %v1503 = vld [vmem:[%s12 + $0x28] sm:$0xf]
        %v1504 = vld [vmem:[%s12 + $0x2c] sm:$0xf]
        %v1505 = vld [vmem:[%s12 + $0x30] sm:$0xf]
        %v1506 = vld [vmem:[%s12 + $0x34] sm:$0xf]
        %v1507 = vld [vmem:[%s12 + $0x38] sm:$0xf]
        %v1508 = vld [vmem:[%s12 + $0x3c] sm:$0xf]
        %v1509 = vld [vmem:[%s12 + $0x40] sm:$0xf]
        %v1510 = vld [vmem:[%s12 + $0x44] sm:$0xf]
        %v1511 = vld [vmem:[%s12 + $0x48] sm:$0xf]
        %v1512 = vld [vmem:[%s12 + $0x4c] sm:$0xf]
        %v1513 = vld [vmem:[%s12 + $0x50] sm:$0xf]
        %v1514 = vld [vmem:[%s12 + $0x54] sm:$0xf]
        %v1515 = vld [vmem:[%s12 + $0x58] sm:$0xf]
        %v1516 = vld [vmem:[%s12 + $0x5c] sm:$0xf]
        %v1517 = vld [vmem:[%s12 + $0x60] sm:$0xf]
        %v1518 = vld [vmem:[%s12 + $0x64] sm:$0xf]
        %v1519 = vld [vmem:[%s12 + $0x68] sm:$0xf]
        %v1520 = vld [vmem:[%s12 + $0x6c] sm:$0xf]
        %v1521 = vld [vmem:[%s12 + $0x70] sm:$0xf]
        %v1522 = vld [vmem:[%s12 + $0x74] sm:$0xf]
        %v1523 = vld [vmem:[%s12 + $0x78] sm:$0xf]
        %v1524 = vld [vmem:[%s12 + $0x7c] sm:$0xf]
        %v1525 = vld [vmem:[%s13] sm:$0x1]
        %v1527 = vlaneseq
        %v1528 = vshrl.u32 %v1527, 7
        %v1529 = vsub.s32 0, %v1528
        %v1530 = vrot.slane %v1525, %v1529
        %v1564 = vunpack.c.l.b16 %v1493
        %v1565 = vunpack.c.l.b16 %v1494
        %v1566 = vunpack.c.l.b16 %v1495
        %v1567 = vunpack.c.l.b16 %v1496
        %v1568 = vunpack.c.l.b16 %v1497
        %v1569 = vunpack.c.l.b16 %v1498
        %v1570 = vunpack.c.l.b16 %v1499
        %v1571 = vunpack.c.l.b16 %v1500
        %v1572 = vunpack.c.l.b16 %v1501
        %v1573 = vunpack.c.l.b16 %v1502
        %v1574 = vunpack.c.l.b16 %v1503
        %v1575 = vunpack.c.l.b16 %v1504
        %v1576 = vunpack.c.l.b16 %v1505
        %v1577 = vunpack.c.l.b16 %v1506
        %v1578 = vunpack.c.l.b16 %v1507
        %v1579 = vunpack.c.l.b16 %v1508
        %v1580 = vunpack.c.l.b16 %v1509
        %v1581 = vunpack.c.l.b16 %v1510
        %v1582 = vunpack.c.l.b16 %v1511
        %v1583 = vunpack.c.l.b16 %v1512
        %v1584 = vunpack.c.l.b16 %v1513
        %v1585 = vunpack.c.l.b16 %v1514
        %v1586 = vunpack.c.l.b16 %v1515
        %v1587 = vunpack.c.l.b16 %v1516
        %v1588 = vunpack.c.l.b16 %v1517
        %v1589 = vunpack.c.l.b16 %v1518
        %v1590 = vunpack.c.l.b16 %v1519
        %v1591 = vunpack.c.l.b16 %v1520
        %v1592 = vunpack.c.l.b16 %v1521
        %v1593 = vunpack.c.l.b16 %v1522
        %v1594 = vunpack.c.l.b16 %v1523
        %v1595 = vunpack.c.l.b16 %v1524
        %v1596 = vpack.c.b16 %v1565, %v1564
        %v1597 = vpack.c.b16 %v1567, %v1566
        %v1598 = vpack.c.b16 %v1569, %v1568
        %v1599 = vpack.c.b16 %v1571, %v1570
        %v1600 = vpack.c.b16 %v1573, %v1572
        %v1601 = vpack.c.b16 %v1575, %v1574
        %v1602 = vpack.c.b16 %v1577, %v1576
        %v1603 = vpack.c.b16 %v1579, %v1578
        %v1604 = vpack.c.b16 %v1581, %v1580
        %v1605 = vpack.c.b16 %v1583, %v1582
        %v1606 = vpack.c.b16 %v1585, %v1584
        %v1607 = vpack.c.b16 %v1587, %v1586
        %v1608 = vpack.c.b16 %v1589, %v1588
        %v1609 = vpack.c.b16 %v1591, %v1590
        %v1610 = vpack.c.b16 %v1593, %v1592
        %v1611 = vpack.c.b16 %v1595, %v1594
        %1628 = vmatprep.subr.bf16.mxu0 0
        %1629 = vmatpush1.bf16.msra.mxu0 %v1596
        %1630 = vmatprep.subr.bf16.mxu0 0
        %1631 = vmatpush1.bf16.msra.mxu0 %v1597
        %1632 = vmatprep.subr.bf16.mxu0 0
        %1633 = vmatpush1.bf16.msra.mxu0 %v1598
        %1634 = vmatprep.subr.bf16.mxu0 0
        %1635 = vmatpush1.bf16.msra.mxu0 %v1599
        %1636 = vmatprep.subr.bf16.mxu0 0
        %1637 = vmatpush1.bf16.msra.mxu0 %v1600
        %1638 = vmatprep.subr.bf16.mxu0 0
        %1639 = vmatpush1.bf16.msra.mxu0 %v1601
        %1640 = vmatprep.subr.bf16.mxu0 0
        %1641 = vmatpush1.bf16.msra.mxu0 %v1602
        %1642 = vmatprep.subr.bf16.mxu0 0
        %1643 = vmatpush1.bf16.msra.mxu0 %v1603
        %1644 = vmatprep.subr.bf16.mxu0 0
        %1645 = vmatpush1.bf16.msra.mxu0 %v1604
        %1646 = vmatprep.subr.bf16.mxu0 0
        %1647 = vmatpush1.bf16.msra.mxu0 %v1605
        %1648 = vmatprep.subr.bf16.mxu0 0
        %1649 = vmatpush1.bf16.msra.mxu0 %v1606
        %1650 = vmatprep.subr.bf16.mxu0 0
        %1651 = vmatpush1.bf16.msra.mxu0 %v1607
        %1652 = vmatprep.subr.bf16.mxu0 0
        %1653 = vmatpush1.bf16.msra.mxu0 %v1608
        %1654 = vmatprep.subr.bf16.mxu0 0
        %1655 = vmatpush1.bf16.msra.mxu0 %v1609
        %1656 = vmatprep.subr.bf16.mxu0 0
        %1657 = vmatpush1.bf16.msra.mxu0 %v1610
        %1658 = vmatprep.subr.bf16.mxu0 0
        %1659 = vmatpush1.bf16.msra.mxu0 %v1611
        %1660 = vmatprep.mubr.bf16.mxu0 %v1490
        %1661 = vmatmul.mubr.bf16.gmra.mrb[0].mxu0 %v1489
        %v1662 = vpop.f32.mrb[0].mxu0
        %v1663 = vadd.f32 %v1530, %v1662
        %v1664 = vpop.f32.mrb[0].mxu0
        %v1665 = vpop.f32.mrb[0].mxu0
        %v1666 = vadd.f32 %v1530, %v1665
        %v1667 = vpop.f32.mrb[0].mxu0
        %1668 = vmatprep.mubr.bf16.mxu0 %v1492
        %1669 = vmatmul.mubr.bf16.gmra.mrb[0].mxu0 %v1491
        %v1670 = vpop.f32.mrb[0].mxu0
        %v1671 = vadd.f32 %v1530, %v1670
        %v1672 = vpop.f32.mrb[0].mxu0
        %v1673 = vpop.f32.mrb[0].mxu0
        %v1674 = vadd.f32 %v1530, %v1673
        %v1675 = vpop.f32.mrb[0].mxu0
        %1676 = vdwg.mxu0
        %v1677 = vmax.f32 %v1663, -120.0
        %v1678 = vmax.f32 %v1666, -120.0
        %v1679 = vmax.f32 %v1671, -120.0
        %v1680 = vmax.f32 %v1674, -120.0
        %v1681 = vmin.f32 %v1677, 120.0
        %v1682 = vmin.f32 %v1678, 120.0
        %v1683 = vmin.f32 %v1679, 120.0
        %v1684 = vmin.f32 %v1680, 120.0
        %1689 = vrot.lane.b32.xlu0 %v1075, 16
        %v1690 = vpop.permute.xlu0 %1689
        %1691 = vrot.lane.b32.xlu0 %v1078, 16
        %v1692 = vpop.permute.xlu0 %1691
        %1693 = vrot.lane.b32.xlu0 %v1083, 16
        %v1694 = vpop.permute.xlu0 %1693
        %1695 = vrot.lane.b32.xlu0 %v1086, 16
        %v1696 = vpop.permute.xlu0 %1695
        %v1701 = vsel %vm564, %v1681, %v1690
        %v1702 = vsel %vm564, %v1682, %v1692
        %v1703 = vsel %vm564, %v1683, %v1694
        %v1704 = vsel %vm564, %v1684, %v1696
        %vm1705 = vcmask 261120
        %1706 = vst.msk [vmem:[%s531] sm:$0xff] %vm1705, %v1701
        %1707 = vst.msk [vmem:[%s531 + $0x8] sm:$0xff] %vm1705, %v1702
        %1708 = vst.msk [vmem:[%s531 + $0x10] sm:$0xff] %vm1705, %v1703
        %1709 = vst.msk [vmem:[%s531 + $0x18] sm:$0xff] %vm1705, %v1704
        %s1710 = smul.u32 4, %s27
        %p1711 = scmp.lt.s32.totalorder %s1710, 11
        %s1712 = scalar_select %p1711, %s1710, 11
        %s1713 = smul.addr %s1712, 8
        %s1714 = scalar_lea.vmem %s14, %s1713
        // Predicated region
        $region89: #{tpu_custom_call.1} parent=75 // pred_check
          %p1715 = pneg %p349
        $region90: #{tpu_custom_call.1} parent=75 // pred_check_branch
          %1717 = sbr.rel (%p1715) target = $region92
        $region91: #{tpu_custom_call.1} parent=75 // pred_region
          %s1718 = smul.u32 4, %s27
        $region92: #{tpu_custom_call.1} parent=75 // pred_fallthru
          _
      $region76: #{tpu_custom_call.1} parent=5 // pred_fallthru
        _
      %p1719 = scmp.le.s32.totalorder 2, %s22
      // Predicated region
      $region93: #{tpu_custom_call.1} parent=5 // pred_check
        %p1720 = pneg %p1719
      $region94: #{tpu_custom_call.1} parent=5 // pred_check_branch
        %1722 = sbr.rel (%p1720) target = $region96
      $region95: #{tpu_custom_call.1} parent=5 // pred_region
        %s1723 = ssub.s32 %s22, 2
        // Predicated region
        $region97: #{tpu_custom_call.1} parent=95 // pred_check
          %p1724 = pneg %p355
        $region98: #{tpu_custom_call.1} parent=95 // pred_check_branch
          %1726 = sbr.rel (%p1724) target = $region100
        $region99: #{tpu_custom_call.1} parent=95 // pred_region
          %s1727 = smul.u32 4, %s28
          %p1728 = scmp.lt.s32.totalorder %s1727, 11
          %s1729 = scalar_select %p1728, %s1727, 11
          %s1730 = smul.addr %s1729, 8
          %s1731 = scalar_lea.vmem %s14, %s1730
        $region100: #{tpu_custom_call.1} parent=95 // pred_fallthru
          _
      $region96: #{tpu_custom_call.1} parent=5 // pred_fallthru
        _
    $region6: #{tpu_custom_call.1} parent=1 // loop_footer
      %s26 = sadd.s32 1, %s22
    $region7: #{tpu_custom_call.1} parent=1 // loop_footer_branch
      %21 = sbr.rel target = $region3
    $region8: #{tpu_custom_call.1} parent=1 // loop_exit
      _
    %1732 = vsyncpa [#allocation3], 1
    %s1733 = scalar_lea.sflag [#allocation3], 1
    %1734 = vsyncpa %s1733, 1
    %1735 = vsyncpa [#allocation5], 1

</llo_original>
